<compile_context>
chip_gen: v7x
topology: tpu7x:2x2x1
jax: 0.10.0
libtpu: 0.0.40
codegen_flags: <defaults>
</compile_context>

<pallas_src>
import functools

import numpy as np
import jax
import jax.numpy as jnp
from jax.experimental import pallas as pl
from jax.experimental.pallas import tpu as pltpu

EPS = 1e-5
KH = KW = 3
KK = KH * KW


# ---------------------------------------------------------------------------
# Fused Pallas kernel
# ---------------------------------------------------------------------------
def _resblock_kernel(x_ref,          # (C, N*H*W)     raw input, channels-major (lane-dense)
                     xs0_ref,        # (9*C, M0)      raw shifted-tap slab for conv0 (stride 2)
                     msk0_ref,       # (9*C, M0)      0/1 padding mask for the conv0 taps
                     xss_ref,        # (9*C, M1)      raw shifted-tap slab for skip conv (stride 4)
                     tgt1_ref,       # (9, 1, M1) i32 source column (into M0) of each conv1 tap, -1 = pad
                     rep9_ref,       # (9*C, C)       one-hot channel-replication matrix
                     w0_ref, b0_ref,  # (Cout, 9*C), (Cout, 1)
                     w1_ref, b1_ref,  # (9*Cout, C), (Cout, 1)
                     ws_ref, bs_ref,  # (Cout, 9*C), (Cout, 1)
                     g0_ref, t0_ref,  # (C, 1), (C, 1)   BN0 gamma / beta
                     g1_ref, t1_ref,  # (C, 1), (C, 1)   BN1 gamma / beta
                     o_ref):          # (Cout, M1)
    f32 = jnp.float32
    cout, m1 = o_ref.shape
    m0 = xs0_ref.shape[1]

    # ---- BN0: fused single-pass batch moments over the full input (biased variance)
    x = x_ref[...]                                          # (C, N*H*W)
    inv_n0 = 1.0 / x.shape[1]
    mu0 = jnp.sum(x, axis=1, keepdims=True) * inv_n0
    ex0 = jnp.sum(x * x, axis=1, keepdims=True) * inv_n0
    var0 = ex0 - mu0 * mu0
    sc0 = g0_ref[...] * jax.lax.rsqrt(var0 + EPS)           # (C, 1)
    sh0 = t0_ref[...] - mu0 * sc0

    # Replicate the per-channel affine to the 36 tap rows (row = p*C + c) with a tiny
    # one-hot matmul (same matmul shape class already proven to lower on this path).
    rep9 = rep9_ref[...]                                    # (9*C, C)
    sc0r = jnp.dot(rep9, jnp.broadcast_to(sc0, (sc0.shape[0], m0)),
                   preferred_element_type=f32)              # (9*C, M0)
    sh0r = jnp.dot(rep9, jnp.broadcast_to(sh0, (sh0.shape[0], m0)),
                   preferred_element_type=f32)

    # ---- stage 0: BN0 -> ReLU -> conv0 (stride 2) as ONE K=36 matmul
    t0m = msk0_ref[...] * jnp.maximum(xs0_ref[...] * sc0r + sh0r, 0.0)   # (9*C, M0)
    h0 = jnp.dot(w0_ref[...], t0m, preferred_element_type=f32) + b0_ref[...]   # (Cout, M0)

    # ---- BN1 on conv0's output (each position appears exactly once), fused moments
    inv_n1 = 1.0 / m0
    mu1 = jnp.sum(h0, axis=1, keepdims=True) * inv_n1
    ex1 = jnp.sum(h0 * h0, axis=1, keepdims=True) * inv_n1
    var1 = ex1 - mu1 * mu1
    sc1 = g1_ref[...] * jax.lax.rsqrt(var1 + EPS)
    sh1 = t1_ref[...] - mu1 * sc1
    a1 = jnp.maximum(h0 * sc1 + sh1, 0.0)                   # (Cout, M0), stays in VMEM

    # ---- skip conv (stride 4) on raw x: ONE K=36 matmul
    acc = jnp.dot(ws_ref[...], xss_ref[...], preferred_element_type=f32)  # (Cout, M1)

    # ---- stage 1 conv (stride 2): one stacked-weight matmul, then 9 selection matmuls
    # whose 0/1 gather matrices are generated in-kernel (no HBM gather constant).
    z1 = jnp.dot(w1_ref[...], a1, preferred_element_type=f32)             # (9*Cout, M0)
    rows = jax.lax.broadcasted_iota(jnp.int32, (m0, m1), 0)               # (M0, M1)
    for p in range(KK):
        sel = jnp.where(rows == tgt1_ref[p], 1.0, 0.0).astype(f32)        # (M0, M1)
        acc = acc + jnp.dot(z1[p * cout:(p + 1) * cout, :], sel,
                            preferred_element_type=f32)
    o_ref[...] = acc + b1_ref[...] + bs_ref[...]


# ---------------------------------------------------------------------------
# Wrapper helpers
# ---------------------------------------------------------------------------
def _full_spec(shape):
    nd = len(shape)
    return pl.BlockSpec(shape, lambda i, nd=nd: (0,) * nd)


def _shift_taps(x_nchw, stride, oh, ow):
    """(9*C, N*oh*ow) slab of zero-padded, shifted, stride-sampled raw-x views, row = p*C + c."""
    n, c, _, _ = x_nchw.shape
    xp = jnp.pad(x_nchw, ((0, 0), (0, 0), (1, 1), (1, 1)))
    taps = []
    for ki in range(KH):
        for kj in range(KW):
            sl = xp[:, :, ki:ki + stride * (oh - 1) + 1:stride,
                          kj:kj + stride * (ow - 1) + 1:stride]           # (N, C, oh, ow)
            taps.append(jnp.transpose(sl, (1, 0, 2, 3)).reshape(c, n * oh * ow))
    return jnp.concatenate(taps, axis=0)                                   # (9*C, N*oh*ow)


def _build_mask0(n, c, h, w, stride, oh, ow):
    """(9*C, n*oh*ow): 1 where the conv0 tap hits a real pixel, 0 where it hits padding."""
    m = np.zeros((KK, c, n, oh, ow), np.float32)
    for ki in range(KH):
        for kj in range(KW):
            p = ki * KW + kj
            for r in range(oh):
                sr = stride * r + ki - 1
                for q in range(ow):
                    sc = stride * q + kj - 1
                    if 0 <= sr < h and 0 <= sc < w:
                        m[p, :, :, r, q] = 1.0
    return m.reshape(KK * c, n * oh * ow)


def _build_tgt1(n, ih, iw, oh, ow, stride):
    """(9, 1, n*oh*ow) int32: source column (into the conv0 output) of each conv1 tap, -1 = padding."""
    t = np.full((KK, 1, n, oh, ow), -1, np.int32)
    for ki in range(KH):
        for kj in range(KW):
            p = ki * KW + kj
            for b in range(n):
                for ro in range(oh):
                    sr = stride * ro + ki - 1
                    for qo in range(ow):
                        sc = stride * qo + kj - 1
                        if 0 <= sr < ih and 0 <= sc < iw:
                            t[p, 0, b, ro, qo] = b * ih * iw + sr * iw + sc
    return t.reshape(KK, 1, n * oh * ow)


def prepare_params(raw, n, h, w):
    """One-time parameter / constant preparation (hoisted out of the jitted hot path)."""
    oh0, ow0 = (h - 1) // 2 + 1, (w - 1) // 2 + 1
    oh1, ow1 = (oh0 - 1) // 2 + 1, (ow0 - 1) // 2 + 1
    cin = raw["w0"].shape[1]

    def w_flat_cols(wt):   # (O, C, KH, KW) -> (O, 9*C), column = p*C + c
        return jnp.transpose(wt, (0, 2, 3, 1)).reshape(wt.shape[0], KK * wt.shape[1])

    def w_stack_rows(wt):  # (O, C, KH, KW) -> (9*O, C), row = p*O + o
        return jnp.transpose(wt, (2, 3, 0, 1)).reshape(KK * wt.shape[0], wt.shape[1])

    col = lambda v: v.reshape(-1, 1)
    return {
        "w0f": w_flat_cols(raw["w0"]), "b0": col(raw["b0"]),
        "w1s": w_stack_rows(raw["w1"]), "b1": col(raw["b1"]),
        "wsf": w_flat_cols(raw["w_skip"]), "bs": col(raw["b_skip"]),
        "g0": col(raw["bn0_gamma"]), "t0": col(raw["bn0_beta"]),
        "g1": col(raw["bn1_gamma"]), "t1": col(raw["bn1_beta"]),
        "rep9": jnp.asarray(np.tile(np.eye(cin, dtype=np.float32), (KK, 1))),
        "mask0": jnp.asarray(_build_mask0(n, cin, h, w, 2, oh0, ow0)),
        "tgt1": jnp.asarray(_build_tgt1(n, oh0, ow0, oh1, ow1, 2)),
    }


# ---------------------------------------------------------------------------
# Full module forward: one fused pallas_call
# ---------------------------------------------------------------------------
def resblock_downsample_forward(x_nchw, params):
    n, c, h, w = x_nchw.shape
    cout = params["b0"].shape[0]
    oh0, ow0 = (h - 1) // 2 + 1, (w - 1) // 2 + 1
    oh1, ow1 = (oh0 - 1) // 2 + 1, (ow0 - 1) // 2 + 1
    assert ((h - 1) // 4 + 1, (w - 1) // 4 + 1) == (oh1, ow1)
    m1 = n * oh1 * ow1

    x = x_nchw.astype(jnp.float32)
    x_cl = jnp.transpose(x, (1, 0, 2, 3)).reshape(c, n * h * w)   # channels-major, lane-dense
    xs0 = _shift_taps(x, 2, oh0, ow0)                             # (9*C, M0) raw conv0 taps
    xss = _shift_taps(x, 4, oh1, ow1)                             # (9*C, M1) raw skip taps

    args = (x_cl, xs0, params["mask0"], xss, params["tgt1"], params["rep9"],
            params["w0f"], params["b0"], params["w1s"], params["b1"],
            params["wsf"], params["bs"],
            params["g0"], params["t0"], params["g1"], params["t1"])

    out_cm = pl.pallas_call(
        _resblock_kernel,
        out_shape=jax.ShapeDtypeStruct((cout, m1), jnp.float32),
        grid=(1,),
        in_specs=[_full_spec(a.shape) for a in args],
        out_specs=_full_spec((cout, m1)),
        compiler_params=pltpu.CompilerParams(dimension_semantics=("arbitrary",)),
    )(*args)

    out = out_cm.reshape(cout, n, oh1, ow1)
    return jnp.transpose(out, (1, 0, 2, 3))   # back to NCHW


# ---------------------------------------------------------------------------
# Pure-JAX reference (correctness check only)
# ---------------------------------------------------------------------------
def _ref_forward(x, params):
    def bn_relu_ref(h, g, b):
        mean = jnp.mean(h, axis=(0, 2, 3), keepdims=True)
        var = jnp.mean((h - mean) ** 2, axis=(0, 2, 3), keepdims=True)
        y = (h - mean) * jax.lax.rsqrt(var + EPS) * g[None, :, None, None] + b[None, :, None, None]
        return jnp.maximum(y, 0.0)

    def conv_ref(h, wgt, b, stride, pad):
        y = jax.lax.conv_general_dilated(
            h, wgt, (stride, stride), [(pad, pad), (pad, pad)],
            dimension_numbers=("NCHW", "OIHW", "NCHW"))
        return y + b[None, :, None, None]

    h = bn_relu_ref(x, params["bn0_gamma"], params["bn0_beta"])
    h = conv_ref(h, params["w0"], params["b0"], 2, 1)
    h = bn_relu_ref(h, params["bn1_gamma"], params["bn1_beta"])
    h = conv_ref(h, params["w1"], params["b1"], 2, 1)
    skip = conv_ref(x, params["w_skip"], params["b_skip"], 4, 1)
    return h + skip


def init_params(key, in_ch, out_ch):
    ks = jax.random.split(key, 10)
    return {
        "bn0_gamma": 1.0 + 0.1 * jax.random.normal(ks[0], (in_ch,), jnp.float32),
        "bn0_beta": 0.1 * jax.random.normal(ks[1], (in_ch,), jnp.float32),
        "w0": 0.1 * jax.random.normal(ks[2], (out_ch, in_ch, KH, KW), jnp.float32),
        "b0": 0.1 * jax.random.normal(ks[3], (out_ch,), jnp.float32),
        "bn1_gamma": 1.0 + 0.1 * jax.random.normal(ks[4], (in_ch,), jnp.float32),
        "bn1_beta": 0.1 * jax.random.normal(ks[5], (in_ch,), jnp.float32),
        "w1": 0.1 * jax.random.normal(ks[6], (out_ch, in_ch, KH, KW), jnp.float32),
        "b1": 0.1 * jax.random.normal(ks[7], (out_ch,), jnp.float32),
        "w_skip": 0.1 * jax.random.normal(ks[8], (out_ch, in_ch, KH, KW), jnp.float32),
        "b_skip": 0.1 * jax.random.normal(ks[9], (out_ch,), jnp.float32),
    }


if __name__ == "__main__":
    key = jax.random.PRNGKey(0)
    k_x, k_p = jax.random.split(key)

    N, C, H, W = 2, 4, 16, 16          # in_channels == out_channels (module requires it)
    x = jax.random.normal(k_x, (N, C, H, W), jnp.float32)
    raw = init_params(k_p, C, C)
    prep = prepare_params(raw, N, H, W)   # hoisted one-time weight / constant prep

    fwd = jax.jit(functools.partial(resblock_downsample_forward, params=prep))
    out = fwd(x)
    jax.block_until_ready(out)

    ref = _ref_forward(x, raw)
    assert out.shape == ref.shape == (N, C, 4, 4), (out.shape, ref.shape)
    err = float(jnp.max(jnp.abs(out - ref)))
    assert jnp.allclose(out, ref, atol=1e-4, rtol=1e-4), err

    print("KERNEL_OK")
</pallas_src>

<mosaic_0001>
module attributes {stable_mosaic.version = 11 : i64} {
  func.func @_resblock_kernel(%arg0: i32, %arg1: memref<4x512xf32, #tpu.memory_space<vmem>>, %arg2: memref<36x128xf32, #tpu.memory_space<vmem>>, %arg3: memref<36x128xf32, #tpu.memory_space<vmem>>, %arg4: memref<36x32xf32, #tpu.memory_space<vmem>>, %arg5: memref<9x1x32xi32, #tpu.memory_space<vmem>>, %arg6: memref<36x4xf32, #tpu.memory_space<vmem>>, %arg7: memref<4x36xf32, #tpu.memory_space<vmem>>, %arg8: memref<4x1xf32, #tpu.memory_space<vmem>>, %arg9: memref<36x4xf32, #tpu.memory_space<vmem>>, %arg10: memref<4x1xf32, #tpu.memory_space<vmem>>, %arg11: memref<4x36xf32, #tpu.memory_space<vmem>>, %arg12: memref<4x1xf32, #tpu.memory_space<vmem>>, %arg13: memref<4x1xf32, #tpu.memory_space<vmem>>, %arg14: memref<4x1xf32, #tpu.memory_space<vmem>>, %arg15: memref<4x1xf32, #tpu.memory_space<vmem>>, %arg16: memref<4x1xf32, #tpu.memory_space<vmem>>, %arg17: memref<4x32xf32, #tpu.memory_space<vmem>>) attributes {dimension_semantics = [#tpu.dimension_semantics<arbitrary>], iteration_bounds = array<i64: 1>, scalar_prefetch = 0 : i64, scratch_operands = 0 : i64, tpu.core_type = #tpu.core_type<tc>, window_params = [{pipeline_mode = #tpu.pipeline_mode<synchronous>, transform_indices = @transform_0, window_bounds = array<i64: 4, 512>}, {pipeline_mode = #tpu.pipeline_mode<synchronous>, transform_indices = @transform_1, window_bounds = array<i64: 36, 128>}, {pipeline_mode = #tpu.pipeline_mode<synchronous>, transform_indices = @transform_2, window_bounds = array<i64: 36, 128>}, {pipeline_mode = #tpu.pipeline_mode<synchronous>, transform_indices = @transform_3, window_bounds = array<i64: 36, 32>}, {pipeline_mode = #tpu.pipeline_mode<synchronous>, transform_indices = @transform_4, window_bounds = array<i64: 9, 1, 32>}, {pipeline_mode = #tpu.pipeline_mode<synchronous>, transform_indices = @transform_5, window_bounds = array<i64: 36, 4>}, {pipeline_mode = #tpu.pipeline_mode<synchronous>, transform_indices = @transform_6, window_bounds = array<i64: 4, 36>}, {pipeline_mode = #tpu.pipeline_mode<synchronous>, transform_indices = @transform_7, window_bounds = array<i64: 4, 1>}, {pipeline_mode = #tpu.pipeline_mode<synchronous>, transform_indices = @transform_8, window_bounds = array<i64: 36, 4>}, {pipeline_mode = #tpu.pipeline_mode<synchronous>, transform_indices = @transform_9, window_bounds = array<i64: 4, 1>}, {pipeline_mode = #tpu.pipeline_mode<synchronous>, transform_indices = @transform_10, window_bounds = array<i64: 4, 36>}, {pipeline_mode = #tpu.pipeline_mode<synchronous>, transform_indices = @transform_11, window_bounds = array<i64: 4, 1>}, {pipeline_mode = #tpu.pipeline_mode<synchronous>, transform_indices = @transform_12, window_bounds = array<i64: 4, 1>}, {pipeline_mode = #tpu.pipeline_mode<synchronous>, transform_indices = @transform_13, window_bounds = array<i64: 4, 1>}, {pipeline_mode = #tpu.pipeline_mode<synchronous>, transform_indices = @transform_14, window_bounds = array<i64: 4, 1>}, {pipeline_mode = #tpu.pipeline_mode<synchronous>, transform_indices = @transform_15, window_bounds = array<i64: 4, 1>}, {pipeline_mode = #tpu.pipeline_mode<synchronous>, transform_indices = @transform_16, window_bounds = array<i64: 4, 32>}]} {
    %c0 = arith.constant 0 : index
    %c0_0 = arith.constant 0 : index
    %0 = vector.load %arg1[%c0, %c0_0] : memref<4x512xf32, #tpu.memory_space<vmem>>, vector<4x512xf32>
    %cst = arith.constant dense<0.000000e+00> : vector<4xf32>
    %1 = vector.multi_reduction <add>, %0, %cst [1] : vector<4x512xf32> to vector<4xf32>
    %2 = vector.shape_cast %1 : vector<4xf32> to vector<4x1xf32>
    %cst_1 = arith.constant 0.001953125 : f32
    %3 = vector.broadcast %cst_1 : f32 to vector<4x1xf32>
    %4 = arith.mulf %2, %3 : vector<4x1xf32>
    %5 = arith.mulf %0, %0 : vector<4x512xf32>
    %cst_2 = arith.constant dense<0.000000e+00> : vector<4xf32>
    %6 = vector.multi_reduction <add>, %5, %cst_2 [1] : vector<4x512xf32> to vector<4xf32>
    %7 = vector.shape_cast %6 : vector<4xf32> to vector<4x1xf32>
    %cst_3 = arith.constant 0.001953125 : f32
    %8 = vector.broadcast %cst_3 : f32 to vector<4x1xf32>
    %9 = arith.mulf %7, %8 : vector<4x1xf32>
    %10 = arith.mulf %4, %4 : vector<4x1xf32>
    %11 = arith.subf %9, %10 : vector<4x1xf32>
    %c0_4 = arith.constant 0 : index
    %c0_5 = arith.constant 0 : index
    %12 = vector.load %arg13[%c0_4, %c0_5] : memref<4x1xf32, #tpu.memory_space<vmem>>, vector<4x1xf32>
    %cst_6 = arith.constant 9.99999974E-6 : f32
    %13 = vector.broadcast %cst_6 : f32 to vector<4x1xf32>
    %14 = arith.addf %11, %13 : vector<4x1xf32>
    %15 = math.rsqrt %14 : vector<4x1xf32>
    %16 = arith.mulf %12, %15 : vector<4x1xf32>
    %c0_7 = arith.constant 0 : index
    %c0_8 = arith.constant 0 : index
    %17 = vector.load %arg14[%c0_7, %c0_8] : memref<4x1xf32, #tpu.memory_space<vmem>>, vector<4x1xf32>
    %18 = arith.mulf %4, %16 : vector<4x1xf32>
    %19 = arith.subf %17, %18 : vector<4x1xf32>
    %c0_9 = arith.constant 0 : index
    %c0_10 = arith.constant 0 : index
    %20 = vector.load %arg6[%c0_9, %c0_10] : memref<36x4xf32, #tpu.memory_space<vmem>>, vector<36x4xf32>
    %21 = vector.shape_cast %16 : vector<4x1xf32> to vector<4x1xf32>
    %22 = vector.broadcast %21 : vector<4x1xf32> to vector<4x128xf32>
    %cst_11 = arith.constant dense<0.000000e+00> : vector<36x128xf32>
    %23 = tpu.matmul %20, %22, %cst_11 {dimension_numbers = #tpu.dot_dimension_numbers<[1], [0], [0], [1], [0, 0, 1, 1], [], []>} : vector<36x4xf32>, vector<4x128xf32>, vector<36x128xf32> -> vector<36x128xf32>
    %24 = vector.shape_cast %19 : vector<4x1xf32> to vector<4x1xf32>
    %25 = vector.broadcast %24 : vector<4x1xf32> to vector<4x128xf32>
    %cst_12 = arith.constant dense<0.000000e+00> : vector<36x128xf32>
    %26 = tpu.matmul %20, %25, %cst_12 {dimension_numbers = #tpu.dot_dimension_numbers<[1], [0], [0], [1], [0, 0, 1, 1], [], []>} : vector<36x4xf32>, vector<4x128xf32>, vector<36x128xf32> -> vector<36x128xf32>
    %c0_13 = arith.constant 0 : index
    %c0_14 = arith.constant 0 : index
    %27 = vector.load %arg3[%c0_13, %c0_14] : memref<36x128xf32, #tpu.memory_space<vmem>>, vector<36x128xf32>
    %c0_15 = arith.constant 0 : index
    %c0_16 = arith.constant 0 : index
    %28 = vector.load %arg2[%c0_15, %c0_16] : memref<36x128xf32, #tpu.memory_space<vmem>>, vector<36x128xf32>
    %29 = arith.mulf %28, %23 : vector<36x128xf32>
    %30 = arith.addf %29, %26 : vector<36x128xf32>
    %cst_17 = arith.constant 0.000000e+00 : f32
    %31 = vector.broadcast %cst_17 : f32 to vector<36x128xf32>
    %32 = arith.maximumf %30, %31 : vector<36x128xf32>
    %33 = arith.mulf %27, %32 : vector<36x128xf32>
    %c0_18 = arith.constant 0 : index
    %c0_19 = arith.constant 0 : index
    %34 = vector.load %arg7[%c0_18, %c0_19] : memref<4x36xf32, #tpu.memory_space<vmem>>, vector<4x36xf32>
    %cst_20 = arith.constant dense<0.000000e+00> : vector<4x128xf32>
    %35 = tpu.matmul %34, %33, %cst_20 {dimension_numbers = #tpu.dot_dimension_numbers<[1], [0], [0], [1], [0, 0, 1, 1], [], []>} : vector<4x36xf32>, vector<36x128xf32>, vector<4x128xf32> -> vector<4x128xf32>
    %c0_21 = arith.constant 0 : index
    %c0_22 = arith.constant 0 : index
    %36 = vector.load %arg8[%c0_21, %c0_22] : memref<4x1xf32, #tpu.memory_space<vmem>>, vector<4x1xf32>
    %37 = vector.broadcast %36 : vector<4x1xf32> to vector<4x128xf32>
    %38 = arith.addf %35, %37 : vector<4x128xf32>
    %cst_23 = arith.constant dense<0.000000e+00> : vector<4xf32>
    %39 = vector.multi_reduction <add>, %38, %cst_23 [1] : vector<4x128xf32> to vector<4xf32>
    %40 = vector.shape_cast %39 : vector<4xf32> to vector<4x1xf32>
    %cst_24 = arith.constant 7.812500e-03 : f32
    %41 = vector.broadcast %cst_24 : f32 to vector<4x1xf32>
    %42 = arith.mulf %40, %41 : vector<4x1xf32>
    %43 = arith.mulf %38, %38 : vector<4x128xf32>
    %cst_25 = arith.constant dense<0.000000e+00> : vector<4xf32>
    %44 = vector.multi_reduction <add>, %43, %cst_25 [1] : vector<4x128xf32> to vector<4xf32>
    %45 = vector.shape_cast %44 : vector<4xf32> to vector<4x1xf32>
    %cst_26 = arith.constant 7.812500e-03 : f32
    %46 = vector.broadcast %cst_26 : f32 to vector<4x1xf32>
    %47 = arith.mulf %45, %46 : vector<4x1xf32>
    %48 = arith.mulf %42, %42 : vector<4x1xf32>
    %49 = arith.subf %47, %48 : vector<4x1xf32>
    %c0_27 = arith.constant 0 : index
    %c0_28 = arith.constant 0 : index
    %50 = vector.load %arg15[%c0_27, %c0_28] : memref<4x1xf32, #tpu.memory_space<vmem>>, vector<4x1xf32>
    %cst_29 = arith.constant 9.99999974E-6 : f32
    %51 = vector.broadcast %cst_29 : f32 to vector<4x1xf32>
    %52 = arith.addf %49, %51 : vector<4x1xf32>
    %53 = math.rsqrt %52 : vector<4x1xf32>
    %54 = arith.mulf %50, %53 : vector<4x1xf32>
    %c0_30 = arith.constant 0 : index
    %c0_31 = arith.constant 0 : index
    %55 = vector.load %arg16[%c0_30, %c0_31] : memref<4x1xf32, #tpu.memory_space<vmem>>, vector<4x1xf32>
    %56 = arith.mulf %42, %54 : vector<4x1xf32>
    %57 = arith.subf %55, %56 : vector<4x1xf32>
    %58 = vector.broadcast %54 : vector<4x1xf32> to vector<4x128xf32>
    %59 = arith.mulf %38, %58 : vector<4x128xf32>
    %60 = vector.broadcast %57 : vector<4x1xf32> to vector<4x128xf32>
    %61 = arith.addf %59, %60 : vector<4x128xf32>
    %cst_32 = arith.constant 0.000000e+00 : f32
    %62 = vector.broadcast %cst_32 : f32 to vector<4x128xf32>
    %63 = arith.maximumf %61, %62 : vector<4x128xf32>
    %c0_33 = arith.constant 0 : index
    %c0_34 = arith.constant 0 : index
    %64 = vector.load %arg11[%c0_33, %c0_34] : memref<4x36xf32, #tpu.memory_space<vmem>>, vector<4x36xf32>
    %c0_35 = arith.constant 0 : index
    %c0_36 = arith.constant 0 : index
    %65 = vector.load %arg4[%c0_35, %c0_36] : memref<36x32xf32, #tpu.memory_space<vmem>>, vector<36x32xf32>
    %cst_37 = arith.constant dense<0.000000e+00> : vector<4x32xf32>
    %66 = tpu.matmul %64, %65, %cst_37 {dimension_numbers = #tpu.dot_dimension_numbers<[1], [0], [0], [1], [0, 0, 1, 1], [], []>} : vector<4x36xf32>, vector<36x32xf32>, vector<4x32xf32> -> vector<4x32xf32>
    %c0_38 = arith.constant 0 : index
    %c0_39 = arith.constant 0 : index
    %67 = vector.load %arg9[%c0_38, %c0_39] : memref<36x4xf32, #tpu.memory_space<vmem>>, vector<36x4xf32>
    %cst_40 = arith.constant dense<0.000000e+00> : vector<36x128xf32>
    %68 = tpu.matmul %67, %63, %cst_40 {dimension_numbers = #tpu.dot_dimension_numbers<[1], [0], [0], [1], [0, 0, 1, 1], [], []>} : vector<36x4xf32>, vector<4x128xf32>, vector<36x128xf32> -> vector<36x128xf32>
    %69 = tpu.iota {dimensions = array<i32: 0>} : vector<128x32xi32>
    %c0_41 = arith.constant 0 : index
    %c0_42 = arith.constant 0 : index
    %c0_43 = arith.constant 0 : index
    %70 = vector.load %arg5[%c0_41, %c0_42, %c0_43] : memref<9x1x32xi32, #tpu.memory_space<vmem>>, vector<1x1x32xi32>
    %71 = vector.shape_cast %70 : vector<1x1x32xi32> to vector<1x32xi32>
    %72 = vector.broadcast %71 : vector<1x32xi32> to vector<128x32xi32>
    %73 = arith.cmpi eq, %69, %72 : vector<128x32xi32>
    %cst_44 = arith.constant 1.000000e+00 : f32
    %cst_45 = arith.constant 0.000000e+00 : f32
    %74 = vector.broadcast %cst_44 : f32 to vector<128x32xf32>
    %75 = vector.broadcast %cst_45 : f32 to vector<128x32xf32>
    %76 = arith.select %73, %74, %75 : vector<128x32xi1>, vector<128x32xf32>
    %77 = vector.extract_strided_slice %68 {offsets = [0, 0], sizes = [4, 128], strides = [1, 1]} : vector<36x128xf32> to vector<4x128xf32>
    %cst_46 = arith.constant dense<0.000000e+00> : vector<4x32xf32>
    %78 = tpu.matmul %77, %76, %cst_46 {dimension_numbers = #tpu.dot_dimension_numbers<[1], [0], [0], [1], [0, 0, 1, 1], [], []>} : vector<4x128xf32>, vector<128x32xf32>, vector<4x32xf32> -> vector<4x32xf32>
    %79 = arith.addf %66, %78 : vector<4x32xf32>
    %c1 = arith.constant 1 : index
    %c0_47 = arith.constant 0 : index
    %c0_48 = arith.constant 0 : index
    %80 = vector.load %arg5[%c1, %c0_47, %c0_48] : memref<9x1x32xi32, #tpu.memory_space<vmem>>, vector<1x1x32xi32>
    %81 = vector.shape_cast %80 : vector<1x1x32xi32> to vector<1x32xi32>
    %82 = vector.broadcast %81 : vector<1x32xi32> to vector<128x32xi32>
    %83 = arith.cmpi eq, %69, %82 : vector<128x32xi32>
    %cst_49 = arith.constant 1.000000e+00 : f32
    %cst_50 = arith.constant 0.000000e+00 : f32
    %84 = vector.broadcast %cst_49 : f32 to vector<128x32xf32>
    %85 = vector.broadcast %cst_50 : f32 to vector<128x32xf32>
    %86 = arith.select %83, %84, %85 : vector<128x32xi1>, vector<128x32xf32>
    %87 = vector.extract_strided_slice %68 {offsets = [4, 0], sizes = [4, 128], strides = [1, 1]} : vector<36x128xf32> to vector<4x128xf32>
    %cst_51 = arith.constant dense<0.000000e+00> : vector<4x32xf32>
    %88 = tpu.matmul %87, %86, %cst_51 {dimension_numbers = #tpu.dot_dimension_numbers<[1], [0], [0], [1], [0, 0, 1, 1], [], []>} : vector<4x128xf32>, vector<128x32xf32>, vector<4x32xf32> -> vector<4x32xf32>
    %89 = arith.addf %79, %88 : vector<4x32xf32>
    %c2 = arith.constant 2 : index
    %c0_52 = arith.constant 0 : index
    %c0_53 = arith.constant 0 : index
    %90 = vector.load %arg5[%c2, %c0_52, %c0_53] : memref<9x1x32xi32, #tpu.memory_space<vmem>>, vector<1x1x32xi32>
    %91 = vector.shape_cast %90 : vector<1x1x32xi32> to vector<1x32xi32>
    %92 = vector.broadcast %91 : vector<1x32xi32> to vector<128x32xi32>
    %93 = arith.cmpi eq, %69, %92 : vector<128x32xi32>
    %cst_54 = arith.constant 1.000000e+00 : f32
    %cst_55 = arith.constant 0.000000e+00 : f32
    %94 = vector.broadcast %cst_54 : f32 to vector<128x32xf32>
    %95 = vector.broadcast %cst_55 : f32 to vector<128x32xf32>
    %96 = arith.select %93, %94, %95 : vector<128x32xi1>, vector<128x32xf32>
    %97 = vector.extract_strided_slice %68 {offsets = [8, 0], sizes = [4, 128], strides = [1, 1]} : vector<36x128xf32> to vector<4x128xf32>
    %cst_56 = arith.constant dense<0.000000e+00> : vector<4x32xf32>
    %98 = tpu.matmul %97, %96, %cst_56 {dimension_numbers = #tpu.dot_dimension_numbers<[1], [0], [0], [1], [0, 0, 1, 1], [], []>} : vector<4x128xf32>, vector<128x32xf32>, vector<4x32xf32> -> vector<4x32xf32>
    %99 = arith.addf %89, %98 : vector<4x32xf32>
    %c3 = arith.constant 3 : index
    %c0_57 = arith.constant 0 : index
    %c0_58 = arith.constant 0 : index
    %100 = vector.load %arg5[%c3, %c0_57, %c0_58] : memref<9x1x32xi32, #tpu.memory_space<vmem>>, vector<1x1x32xi32>
    %101 = vector.shape_cast %100 : vector<1x1x32xi32> to vector<1x32xi32>
    %102 = vector.broadcast %101 : vector<1x32xi32> to vector<128x32xi32>
    %103 = arith.cmpi eq, %69, %102 : vector<128x32xi32>
    %cst_59 = arith.constant 1.000000e+00 : f32
    %cst_60 = arith.constant 0.000000e+00 : f32
    %104 = vector.broadcast %cst_59 : f32 to vector<128x32xf32>
    %105 = vector.broadcast %cst_60 : f32 to vector<128x32xf32>
    %106 = arith.select %103, %104, %105 : vector<128x32xi1>, vector<128x32xf32>
    %107 = vector.extract_strided_slice %68 {offsets = [12, 0], sizes = [4, 128], strides = [1, 1]} : vector<36x128xf32> to vector<4x128xf32>
    %cst_61 = arith.constant dense<0.000000e+00> : vector<4x32xf32>
    %108 = tpu.matmul %107, %106, %cst_61 {dimension_numbers = #tpu.dot_dimension_numbers<[1], [0], [0], [1], [0, 0, 1, 1], [], []>} : vector<4x128xf32>, vector<128x32xf32>, vector<4x32xf32> -> vector<4x32xf32>
    %109 = arith.addf %99, %108 : vector<4x32xf32>
    %c4 = arith.constant 4 : index
    %c0_62 = arith.constant 0 : index
    %c0_63 = arith.constant 0 : index
    %110 = vector.load %arg5[%c4, %c0_62, %c0_63] : memref<9x1x32xi32, #tpu.memory_space<vmem>>, vector<1x1x32xi32>
    %111 = vector.shape_cast %110 : vector<1x1x32xi32> to vector<1x32xi32>
    %112 = vector.broadcast %111 : vector<1x32xi32> to vector<128x32xi32>
    %113 = arith.cmpi eq, %69, %112 : vector<128x32xi32>
    %cst_64 = arith.constant 1.000000e+00 : f32
    %cst_65 = arith.constant 0.000000e+00 : f32
    %114 = vector.broadcast %cst_64 : f32 to vector<128x32xf32>
    %115 = vector.broadcast %cst_65 : f32 to vector<128x32xf32>
    %116 = arith.select %113, %114, %115 : vector<128x32xi1>, vector<128x32xf32>
    %117 = vector.extract_strided_slice %68 {offsets = [16, 0], sizes = [4, 128], strides = [1, 1]} : vector<36x128xf32> to vector<4x128xf32>
    %cst_66 = arith.constant dense<0.000000e+00> : vector<4x32xf32>
    %118 = tpu.matmul %117, %116, %cst_66 {dimension_numbers = #tpu.dot_dimension_numbers<[1], [0], [0], [1], [0, 0, 1, 1], [], []>} : vector<4x128xf32>, vector<128x32xf32>, vector<4x32xf32> -> vector<4x32xf32>
    %119 = arith.addf %109, %118 : vector<4x32xf32>
    %c5 = arith.constant 5 : index
    %c0_67 = arith.constant 0 : index
    %c0_68 = arith.constant 0 : index
    %120 = vector.load %arg5[%c5, %c0_67, %c0_68] : memref<9x1x32xi32, #tpu.memory_space<vmem>>, vector<1x1x32xi32>
    %121 = vector.shape_cast %120 : vector<1x1x32xi32> to vector<1x32xi32>
    %122 = vector.broadcast %121 : vector<1x32xi32> to vector<128x32xi32>
    %123 = arith.cmpi eq, %69, %122 : vector<128x32xi32>
    %cst_69 = arith.constant 1.000000e+00 : f32
    %cst_70 = arith.constant 0.000000e+00 : f32
    %124 = vector.broadcast %cst_69 : f32 to vector<128x32xf32>
    %125 = vector.broadcast %cst_70 : f32 to vector<128x32xf32>
    %126 = arith.select %123, %124, %125 : vector<128x32xi1>, vector<128x32xf32>
    %127 = vector.extract_strided_slice %68 {offsets = [20, 0], sizes = [4, 128], strides = [1, 1]} : vector<36x128xf32> to vector<4x128xf32>
    %cst_71 = arith.constant dense<0.000000e+00> : vector<4x32xf32>
    %128 = tpu.matmul %127, %126, %cst_71 {dimension_numbers = #tpu.dot_dimension_numbers<[1], [0], [0], [1], [0, 0, 1, 1], [], []>} : vector<4x128xf32>, vector<128x32xf32>, vector<4x32xf32> -> vector<4x32xf32>
    %129 = arith.addf %119, %128 : vector<4x32xf32>
    %c6 = arith.constant 6 : index
    %c0_72 = arith.constant 0 : index
    %c0_73 = arith.constant 0 : index
    %130 = vector.load %arg5[%c6, %c0_72, %c0_73] : memref<9x1x32xi32, #tpu.memory_space<vmem>>, vector<1x1x32xi32>
    %131 = vector.shape_cast %130 : vector<1x1x32xi32> to vector<1x32xi32>
    %132 = vector.broadcast %131 : vector<1x32xi32> to vector<128x32xi32>
    %133 = arith.cmpi eq, %69, %132 : vector<128x32xi32>
    %cst_74 = arith.constant 1.000000e+00 : f32
    %cst_75 = arith.constant 0.000000e+00 : f32
    %134 = vector.broadcast %cst_74 : f32 to vector<128x32xf32>
    %135 = vector.broadcast %cst_75 : f32 to vector<128x32xf32>
    %136 = arith.select %133, %134, %135 : vector<128x32xi1>, vector<128x32xf32>
    %137 = vector.extract_strided_slice %68 {offsets = [24, 0], sizes = [4, 128], strides = [1, 1]} : vector<36x128xf32> to vector<4x128xf32>
    %cst_76 = arith.constant dense<0.000000e+00> : vector<4x32xf32>
    %138 = tpu.matmul %137, %136, %cst_76 {dimension_numbers = #tpu.dot_dimension_numbers<[1], [0], [0], [1], [0, 0, 1, 1], [], []>} : vector<4x128xf32>, vector<128x32xf32>, vector<4x32xf32> -> vector<4x32xf32>
    %139 = arith.addf %129, %138 : vector<4x32xf32>
    %c7 = arith.constant 7 : index
    %c0_77 = arith.constant 0 : index
    %c0_78 = arith.constant 0 : index
    %140 = vector.load %arg5[%c7, %c0_77, %c0_78] : memref<9x1x32xi32, #tpu.memory_space<vmem>>, vector<1x1x32xi32>
    %141 = vector.shape_cast %140 : vector<1x1x32xi32> to vector<1x32xi32>
    %142 = vector.broadcast %141 : vector<1x32xi32> to vector<128x32xi32>
    %143 = arith.cmpi eq, %69, %142 : vector<128x32xi32>
    %cst_79 = arith.constant 1.000000e+00 : f32
    %cst_80 = arith.constant 0.000000e+00 : f32
    %144 = vector.broadcast %cst_79 : f32 to vector<128x32xf32>
    %145 = vector.broadcast %cst_80 : f32 to vector<128x32xf32>
    %146 = arith.select %143, %144, %145 : vector<128x32xi1>, vector<128x32xf32>
    %147 = vector.extract_strided_slice %68 {offsets = [28, 0], sizes = [4, 128], strides = [1, 1]} : vector<36x128xf32> to vector<4x128xf32>
    %cst_81 = arith.constant dense<0.000000e+00> : vector<4x32xf32>
    %148 = tpu.matmul %147, %146, %cst_81 {dimension_numbers = #tpu.dot_dimension_numbers<[1], [0], [0], [1], [0, 0, 1, 1], [], []>} : vector<4x128xf32>, vector<128x32xf32>, vector<4x32xf32> -> vector<4x32xf32>
    %149 = arith.addf %139, %148 : vector<4x32xf32>
    %c8 = arith.constant 8 : index
    %c0_82 = arith.constant 0 : index
    %c0_83 = arith.constant 0 : index
    %150 = vector.load %arg5[%c8, %c0_82, %c0_83] : memref<9x1x32xi32, #tpu.memory_space<vmem>>, vector<1x1x32xi32>
    %151 = vector.shape_cast %150 : vector<1x1x32xi32> to vector<1x32xi32>
    %152 = vector.broadcast %151 : vector<1x32xi32> to vector<128x32xi32>
    %153 = arith.cmpi eq, %69, %152 : vector<128x32xi32>
    %cst_84 = arith.constant 1.000000e+00 : f32
    %cst_85 = arith.constant 0.000000e+00 : f32
    %154 = vector.broadcast %cst_84 : f32 to vector<128x32xf32>
    %155 = vector.broadcast %cst_85 : f32 to vector<128x32xf32>
    %156 = arith.select %153, %154, %155 : vector<128x32xi1>, vector<128x32xf32>
    %157 = vector.extract_strided_slice %68 {offsets = [32, 0], sizes = [4, 128], strides = [1, 1]} : vector<36x128xf32> to vector<4x128xf32>
    %cst_86 = arith.constant dense<0.000000e+00> : vector<4x32xf32>
    %158 = tpu.matmul %157, %156, %cst_86 {dimension_numbers = #tpu.dot_dimension_numbers<[1], [0], [0], [1], [0, 0, 1, 1], [], []>} : vector<4x128xf32>, vector<128x32xf32>, vector<4x32xf32> -> vector<4x32xf32>
    %159 = arith.addf %149, %158 : vector<4x32xf32>
    %c0_87 = arith.constant 0 : index
    %c0_88 = arith.constant 0 : index
    %160 = vector.load %arg10[%c0_87, %c0_88] : memref<4x1xf32, #tpu.memory_space<vmem>>, vector<4x1xf32>
    %161 = vector.broadcast %160 : vector<4x1xf32> to vector<4x32xf32>
    %162 = arith.addf %159, %161 : vector<4x32xf32>
    %c0_89 = arith.constant 0 : index
    %c0_90 = arith.constant 0 : index
    %163 = vector.load %arg12[%c0_89, %c0_90] : memref<4x1xf32, #tpu.memory_space<vmem>>, vector<4x1xf32>
    %164 = vector.broadcast %163 : vector<4x1xf32> to vector<4x32xf32>
    %165 = arith.addf %162, %164 : vector<4x32xf32>
    %c0_91 = arith.constant 0 : index
    %c0_92 = arith.constant 0 : index
    %166 = vector.load %arg17[%c0_91, %c0_92] : memref<4x32xf32, #tpu.memory_space<vmem>>, vector<4x32xf32>
    tpu.vector_store %arg17[%c0_91, %c0_92], %165 {strides = array<i32>} : memref<4x32xf32, #tpu.memory_space<vmem>>, vector<4x32xf32>,
    return
  }
  func.func @transform_0(%arg0: i32) -> (i32, i32) {
    %c0_i32 = arith.constant 0 : i32
    %c0_i32_0 = arith.constant 0 : i32
    %c0_i32_1 = arith.constant 0 : i32
    return %c0_i32, %c0_i32_0 : i32, i32
  }
  func.func @transform_1(%arg0: i32) -> (i32, i32) {
    %c0_i32 = arith.constant 0 : i32
    %c0_i32_0 = arith.constant 0 : i32
    %c0_i32_1 = arith.constant 0 : i32
    return %c0_i32, %c0_i32_0 : i32, i32
  }
  func.func @transform_2(%arg0: i32) -> (i32, i32) {
    %c0_i32 = arith.constant 0 : i32
    %c0_i32_0 = arith.constant 0 : i32
    %c0_i32_1 = arith.constant 0 : i32
    return %c0_i32, %c0_i32_0 : i32, i32
  }
  func.func @transform_3(%arg0: i32) -> (i32, i32) {
    %c0_i32 = arith.constant 0 : i32
    %c0_i32_0 = arith.constant 0 : i32
    %c0_i32_1 = arith.constant 0 : i32
    return %c0_i32, %c0_i32_0 : i32, i32
  }
  func.func @transform_4(%arg0: i32) -> (i32, i32, i32) {
    %c0_i32 = arith.constant 0 : i32
    %c0_i32_0 = arith.constant 0 : i32
    %c0_i32_1 = arith.constant 0 : i32
    %c0_i32_2 = arith.constant 0 : i32
    return %c0_i32, %c0_i32_0, %c0_i32_1 : i32, i32, i32
  }
  func.func @transform_5(%arg0: i32) -> (i32, i32) {
    %c0_i32 = arith.constant 0 : i32
    %c0_i32_0 = arith.constant 0 : i32
    %c0_i32_1 = arith.constant 0 : i32
    return %c0_i32, %c0_i32_0 : i32, i32
  }
  func.func @transform_6(%arg0: i32) -> (i32, i32) {
    %c0_i32 = arith.constant 0 : i32
    %c0_i32_0 = arith.constant 0 : i32
    %c0_i32_1 = arith.constant 0 : i32
    return %c0_i32, %c0_i32_0 : i32, i32
  }
  func.func @transform_7(%arg0: i32) -> (i32, i32) {
    %c0_i32 = arith.constant 0 : i32
    %c0_i32_0 = arith.constant 0 : i32
    %c0_i32_1 = arith.constant 0 : i32
    return %c0_i32, %c0_i32_0 : i32, i32
  }
  func.func @transform_8(%arg0: i32) -> (i32, i32) {
    %c0_i32 = arith.constant 0 : i32
    %c0_i32_0 = arith.constant 0 : i32
    %c0_i32_1 = arith.constant 0 : i32
    return %c0_i32, %c0_i32_0 : i32, i32
  }
  func.func @transform_9(%arg0: i32) -> (i32, i32) {
    %c0_i32 = arith.constant 0 : i32
    %c0_i32_0 = arith.constant 0 : i32
    %c0_i32_1 = arith.constant 0 : i32
    return %c0_i32, %c0_i32_0 : i32, i32
  }
  func.func @transform_10(%arg0: i32) -> (i32, i32) {
    %c0_i32 = arith.constant 0 : i32
    %c0_i32_0 = arith.constant 0 : i32
    %c0_i32_1 = arith.constant 0 : i32
    return %c0_i32, %c0_i32_0 : i32, i32
  }
  func.func @transform_11(%arg0: i32) -> (i32, i32) {
    %c0_i32 = arith.constant 0 : i32
    %c0_i32_0 = arith.constant 0 : i32
    %c0_i32_1 = arith.constant 0 : i32
    return %c0_i32, %c0_i32_0 : i32, i32
  }
  func.func @transform_12(%arg0: i32) -> (i32, i32) {
    %c0_i32 = arith.constant 0 : i32
    %c0_i32_0 = arith.constant 0 : i32
    %c0_i32_1 = arith.constant 0 : i32
    return %c0_i32, %c0_i32_0 : i32, i32
  }
  func.func @transform_13(%arg0: i32) -> (i32, i32) {
    %c0_i32 = arith.constant 0 : i32
    %c0_i32_0 = arith.constant 0 : i32
    %c0_i32_1 = arith.constant 0 : i32
    return %c0_i32, %c0_i32_0 : i32, i32
  }
  func.func @transform_14(%arg0: i32) -> (i32, i32) {
    %c0_i32 = arith.constant 0 : i32
    %c0_i32_0 = arith.constant 0 : i32
    %c0_i32_1 = arith.constant 0 : i32
    return %c0_i32, %c0_i32_0 : i32, i32
  }
  func.func @transform_15(%arg0: i32) -> (i32, i32) {
    %c0_i32 = arith.constant 0 : i32
    %c0_i32_0 = arith.constant 0 : i32
    %c0_i32_1 = arith.constant 0 : i32
    return %c0_i32, %c0_i32_0 : i32, i32
  }
  func.func @transform_16(%arg0: i32) -> (i32, i32) {
    %c0_i32 = arith.constant 0 : i32
    %c0_i32_0 = arith.constant 0 : i32
    %c0_i32_1 = arith.constant 0 : i32
    return %c0_i32, %c0_i32_0 : i32, i32
  }
}

</mosaic_0001>

<llo_original>
// kernel: resblock_downsample_forward.1
$region0: #{resblock_downsample_forward.1}
  #allocation0 [shape = 'u32[]', space=smem, size = 0x4, offset = 0x4, fixed_abs, tag = 'smem constant byte address 0x4 - core index']
  #allocation1 [shape = 'u32[144,128]{1,0:T(1,128)}', space=vmem, size = 0x12000, scoped, tag = 'internal scratch']
  %s0 = inlined_call_operand.vmem [shape: f32[4,512], index: 0, kind: input, shape index: {}]
  %s1 = inlined_call_operand.vmem [shape: f32[36,128], index: 1, kind: input, shape index: {}]
  %s2 = inlined_call_operand.vmem [shape: f32[36,128], index: 2, kind: input, shape index: {}]
  %s3 = inlined_call_operand.vmem [shape: f32[36,32], index: 3, kind: input, shape index: {}]
  %s4 = inlined_call_operand.vmem [shape: s32[9,1,32], index: 4, kind: input, shape index: {}]
  %s5 = inlined_call_operand.vmem [shape: f32[36,4], index: 5, kind: input, shape index: {}]
  %s6 = inlined_call_operand.vmem [shape: f32[4,36], index: 6, kind: input, shape index: {}]
  %s7 = inlined_call_operand.vmem [shape: f32[4,1], index: 7, kind: input, shape index: {}]
  %s8 = inlined_call_operand.vmem [shape: f32[36,4], index: 8, kind: input, shape index: {}]
  %s9 = inlined_call_operand.vmem [shape: f32[4,1], index: 9, kind: input, shape index: {}]
  %s10 = inlined_call_operand.vmem [shape: f32[4,36], index: 10, kind: input, shape index: {}]
  %s11 = inlined_call_operand.vmem [shape: f32[4,1], index: 11, kind: input, shape index: {}]
  %s12 = inlined_call_operand.vmem [shape: f32[4,1], index: 12, kind: input, shape index: {}]
  %s13 = inlined_call_operand.vmem [shape: f32[4,1], index: 13, kind: input, shape index: {}]
  %s14 = inlined_call_operand.vmem [shape: f32[4,1], index: 14, kind: input, shape index: {}]
  %s15 = inlined_call_operand.vmem [shape: f32[4,1], index: 15, kind: input, shape index: {}]
  %s16 = inlined_call_operand.vmem [shape: f32[4,32], index: 16, kind: output, shape index: {}]
  %s17 = sld [smem:[#allocation0]]
  $region74: #{resblock_downsample_forward.1} parent=0
    _
  %s19 = ssub.s32 1, %s17
  %s20 = scalar_select 0, %s19, %s17
  // Predicated region
  $region2: #{resblock_downsample_forward.1} parent=0 // pred_check
    _
  $region3: #{resblock_downsample_forward.1} parent=0 // pred_check_branch
    %22 = sbr.rel (0) target = $region5
  $region4: #{resblock_downsample_forward.1} parent=0 // pred_region
    _
  $region5: #{resblock_downsample_forward.1} parent=0 // pred_fallthru
    _
  // Predicated region
  $region6: #{resblock_downsample_forward.1} parent=0 // pred_check
    _
  $region7: #{resblock_downsample_forward.1} parent=0 // pred_check_branch
    %24 = sbr.rel (0) target = $region9
  $region8: #{resblock_downsample_forward.1} parent=0 // pred_region
    _
  $region9: #{resblock_downsample_forward.1} parent=0 // pred_fallthru
    _
  // Predicated region
  $region10: #{resblock_downsample_forward.1} parent=0 // pred_check
    _
  $region11: #{resblock_downsample_forward.1} parent=0 // pred_check_branch
    %26 = sbr.rel (0) target = $region13
  $region12: #{resblock_downsample_forward.1} parent=0 // pred_region
    _
  $region13: #{resblock_downsample_forward.1} parent=0 // pred_fallthru
    _
  // Predicated region
  $region14: #{resblock_downsample_forward.1} parent=0 // pred_check
    _
  $region15: #{resblock_downsample_forward.1} parent=0 // pred_check_branch
    %28 = sbr.rel (0) target = $region17
  $region16: #{resblock_downsample_forward.1} parent=0 // pred_region
    _
  $region17: #{resblock_downsample_forward.1} parent=0 // pred_fallthru
    _
  // Predicated region
  $region18: #{resblock_downsample_forward.1} parent=0 // pred_check
    _
  $region19: #{resblock_downsample_forward.1} parent=0 // pred_check_branch
    %30 = sbr.rel (0) target = $region21
  $region20: #{resblock_downsample_forward.1} parent=0 // pred_region
    _
  $region21: #{resblock_downsample_forward.1} parent=0 // pred_fallthru
    _
  // Predicated region
  $region22: #{resblock_downsample_forward.1} parent=0 // pred_check
    _
  $region23: #{resblock_downsample_forward.1} parent=0 // pred_check_branch
    %32 = sbr.rel (0) target = $region25
  $region24: #{resblock_downsample_forward.1} parent=0 // pred_region
    _
  $region25: #{resblock_downsample_forward.1} parent=0 // pred_fallthru
    _
  // Predicated region
  $region26: #{resblock_downsample_forward.1} parent=0 // pred_check
    _
  $region27: #{resblock_downsample_forward.1} parent=0 // pred_check_branch
    %34 = sbr.rel (0) target = $region29
  $region28: #{resblock_downsample_forward.1} parent=0 // pred_region
    _
  $region29: #{resblock_downsample_forward.1} parent=0 // pred_fallthru
    _
  // Predicated region
  $region30: #{resblock_downsample_forward.1} parent=0 // pred_check
    _
  $region31: #{resblock_downsample_forward.1} parent=0 // pred_check_branch
    %36 = sbr.rel (0) target = $region33
  $region32: #{resblock_downsample_forward.1} parent=0 // pred_region
    _
  $region33: #{resblock_downsample_forward.1} parent=0 // pred_fallthru
    _
  // Predicated region
  $region34: #{resblock_downsample_forward.1} parent=0 // pred_check
    _
  $region35: #{resblock_downsample_forward.1} parent=0 // pred_check_branch
    %38 = sbr.rel (0) target = $region37
  $region36: #{resblock_downsample_forward.1} parent=0 // pred_region
    _
  $region37: #{resblock_downsample_forward.1} parent=0 // pred_fallthru
    _
  // Predicated region
  $region38: #{resblock_downsample_forward.1} parent=0 // pred_check
    _
  $region39: #{resblock_downsample_forward.1} parent=0 // pred_check_branch
    %40 = sbr.rel (0) target = $region41
  $region40: #{resblock_downsample_forward.1} parent=0 // pred_region
    _
  $region41: #{resblock_downsample_forward.1} parent=0 // pred_fallthru
    _
  // Predicated region
  $region42: #{resblock_downsample_forward.1} parent=0 // pred_check
    _
  $region43: #{resblock_downsample_forward.1} parent=0 // pred_check_branch
    %42 = sbr.rel (0) target = $region45
  $region44: #{resblock_downsample_forward.1} parent=0 // pred_region
    _
  $region45: #{resblock_downsample_forward.1} parent=0 // pred_fallthru
    _
  // Predicated region
  $region46: #{resblock_downsample_forward.1} parent=0 // pred_check
    _
  $region47: #{resblock_downsample_forward.1} parent=0 // pred_check_branch
    %44 = sbr.rel (0) target = $region49
  $region48: #{resblock_downsample_forward.1} parent=0 // pred_region
    _
  $region49: #{resblock_downsample_forward.1} parent=0 // pred_fallthru
    _
  // Predicated region
  $region50: #{resblock_downsample_forward.1} parent=0 // pred_check
    _
  $region51: #{resblock_downsample_forward.1} parent=0 // pred_check_branch
    %46 = sbr.rel (0) target = $region53
  $region52: #{resblock_downsample_forward.1} parent=0 // pred_region
    _
  $region53: #{resblock_downsample_forward.1} parent=0 // pred_fallthru
    _
  // Predicated region
  $region54: #{resblock_downsample_forward.1} parent=0 // pred_check
    _
  $region55: #{resblock_downsample_forward.1} parent=0 // pred_check_branch
    %48 = sbr.rel (0) target = $region57
  $region56: #{resblock_downsample_forward.1} parent=0 // pred_region
    _
  $region57: #{resblock_downsample_forward.1} parent=0 // pred_fallthru
    _
  // Predicated region
  $region58: #{resblock_downsample_forward.1} parent=0 // pred_check
    _
  $region59: #{resblock_downsample_forward.1} parent=0 // pred_check_branch
    %50 = sbr.rel (0) target = $region61
  $region60: #{resblock_downsample_forward.1} parent=0 // pred_region
    _
  $region61: #{resblock_downsample_forward.1} parent=0 // pred_fallthru
    _
  // Predicated region
  $region62: #{resblock_downsample_forward.1} parent=0 // pred_check
    _
  $region63: #{resblock_downsample_forward.1} parent=0 // pred_check_branch
    %52 = sbr.rel (0) target = $region65
  $region64: #{resblock_downsample_forward.1} parent=0 // pred_region
    _
  $region65: #{resblock_downsample_forward.1} parent=0 // pred_fallthru
    _
  %v53 = vld [vmem:[%s0] sm:$0xff]
  %v54 = vld [vmem:[%s0 + $0x8] sm:$0xff]
  %v57 = vcombine.high %v53, %v53
  %v58 = vcombine.high %v54, %v54
  %vm61 = vcmask 1043456
  %v62 = vsel %vm61, %v53, 0.0
  %v63 = vsel %vm61, %v57, 0.0
  %v64 = vadd.f32 %v62, %v63
  %v65 = vsel %vm61, %v54, 0.0
  %v66 = vadd.f32 %v64, %v65
  %v67 = vsel %vm61, %v58, 0.0
  %v68 = vadd.f32 %v66, %v67
  %69 = vadd.xlane.f32.xlu0 %v68
  %v70 = vpop.xlane.xlu0 %69
  %v71 = vmul.f32 %v70, 0.001953125
  %v72 = vmul.f32 %v53, %v53
  %v73 = vmul.f32 %v54, %v54
  %v76 = vcombine.high %v72, %v72
  %v77 = vcombine.high %v73, %v73
  %v80 = vsel %vm61, %v72, 0.0
  %v81 = vsel %vm61, %v76, 0.0
  %v82 = vadd.f32 %v80, %v81
  %v83 = vsel %vm61, %v73, 0.0
  %v84 = vadd.f32 %v82, %v83
  %v85 = vsel %vm61, %v77, 0.0
  %v86 = vadd.f32 %v84, %v85
  %87 = vadd.xlane.f32.xlu0 %v86
  %v88 = vpop.xlane.xlu0 %87
  %v89 = vmul.f32 %v88, 0.001953125
  %v90 = vmul.f32 %v71, %v71
  %v91 = vsub.f32 %v89, %v90
  %v92 = vld [vmem:[%s12] sm:$0xf]
  %v93 = vadd.f32 %v91, 1e-05
  %v94 = vrsqrt.pop %v93
  %v95 = vmul.f32 %v92, %v94
  %v96 = vld [vmem:[%s13] sm:$0xf]
  %v97 = vmul.f32 %v71, %v95
  %v98 = vsub.f32 %v96, %v97
  %v99 = vld [vmem:[%s5] sm:$0xff]
  %v100 = vld [vmem:[%s5 + $0x8] sm:$0xff]
  %v101 = vld [vmem:[%s5 + $0x10] sm:$0xff]
  %v102 = vld [vmem:[%s5 + $0x18] sm:$0xff]
  %v103 = vld [vmem:[%s5 + $0x20] sm:$0xf]
  %105 = vset.pattern.permute.xlu0 0
  %106 = vperm.xlu0 %105, %v95
  %v107 = vpop.permute.xlu0 %106
  %vm108 = vcmask 31744
  %v110 = vsel %vm108, %v99, 0
  %v113 = vsel %vm108, %v100, 0
  %v116 = vsel %vm108, %v101, 0
  %v119 = vsel %vm108, %v102, 0
  %v122 = vsel %vm108, %v103, 0
  %v124 = vsel %vm61, %v107, 0
  %126 = vmatprep.subr.mxu0 0.0
  %127 = vmatpush1.msra.mxu0 %v124
  %128 = vmatprep.subr.mxu0 0.0
  %129 = vmatpush1.msra.mxu0 0.0
  %130 = vmatprep.subr.mxu0 0.0
  %131 = vmatpush1.msra.mxu0 0.0
  %132 = vmatprep.subr.mxu0 0.0
  %133 = vmatpush1.msra.mxu0 0.0
  %134 = vmatprep.subr.mxu0 0.0
  %135 = vmatpush1.msra.mxu0 0.0
  %136 = vmatprep.subr.mxu0 0.0
  %137 = vmatpush1.msra.mxu0 0.0
  %138 = vmatprep.subr.mxu0 0.0
  %139 = vmatpush1.msra.mxu0 0.0
  %140 = vmatprep.subr.mxu0 0.0
  %141 = vmatpush1.msra.mxu0 0.0
  %142 = vmatprep.subr.mxu0 0.0
  %143 = vmatpush1.msra.mxu0 0.0
  %144 = vmatprep.subr.mxu0 0.0
  %145 = vmatpush1.msra.mxu0 0.0
  %146 = vmatprep.subr.mxu0 0.0
  %147 = vmatpush1.msra.mxu0 0.0
  %148 = vmatprep.subr.mxu0 0.0
  %149 = vmatpush1.msra.mxu0 0.0
  %150 = vmatprep.subr.mxu0 0.0
  %151 = vmatpush1.msra.mxu0 0.0
  %152 = vmatprep.subr.mxu0 0.0
  %153 = vmatpush1.msra.mxu0 0.0
  %154 = vmatprep.subr.mxu0 0.0
  %155 = vmatpush1.msra.mxu0 0.0
  %156 = vmatprep.subr.mxu0 0.0
  %157 = vmatpush1.msra.mxu0 0.0
  %158 = vmatprep.subr.mxu0 0.0
  %159 = vmatpush1.msra.mxu0 0.0
  %160 = vmatprep.subr.mxu0 0.0
  %161 = vmatpush1.msra.mxu0 0.0
  %162 = vmatprep.subr.mxu0 0.0
  %163 = vmatpush1.msra.mxu0 0.0
  %164 = vmatprep.subr.mxu0 0.0
  %165 = vmatpush1.msra.mxu0 0.0
  %166 = vmatprep.subr.mxu0 0.0
  %167 = vmatpush1.msra.mxu0 0.0
  %168 = vmatprep.subr.mxu0 0.0
  %169 = vmatpush1.msra.mxu0 0.0
  %170 = vmatprep.subr.mxu0 0.0
  %171 = vmatpush1.msra.mxu0 0.0
  %172 = vmatprep.subr.mxu0 0.0
  %173 = vmatpush1.msra.mxu0 0.0
  %174 = vmatprep.subr.mxu0 0.0
  %175 = vmatpush1.msra.mxu0 0.0
  %176 = vmatprep.subr.mxu0 0.0
  %177 = vmatpush1.msra.mxu0 0.0
  %178 = vmatprep.subr.mxu0 0.0
  %179 = vmatpush1.msra.mxu0 0.0
  %180 = vmatprep.subr.mxu0 0.0
  %181 = vmatpush1.msra.mxu0 0.0
  %182 = vmatprep.subr.mxu0 0.0
  %183 = vmatpush1.msra.mxu0 0.0
  %184 = vmatprep.subr.mxu0 0.0
  %185 = vmatpush1.msra.mxu0 0.0
  %186 = vmatprep.subr.mxu0 0.0
  %187 = vmatpush1.msra.mxu0 0.0
  %188 = vmatprep.subr.mxu0 0.0
  %189 = vmatpush1.msra.mxu0 0.0
  %190 = vmatprep.mubr.f32.mxu0 0.0
  %191 = vmatmul.mubr.f32.gmra.mrb[0].mxu0 %v110
  %v192 = vpop.f32.mrb[0].mxu0
  %v193 = vadd.f32 0.0, %v192
  %v194 = vpop.f32.mrb[0].mxu0
  %195 = vmatprep.mubr.f32.mxu0 0.0
  %196 = vmatmul.mubr.f32.gmra.mrb[0].mxu0 %v113
  %v197 = vpop.f32.mrb[0].mxu0
  %v198 = vadd.f32 0.0, %v197
  %v199 = vpop.f32.mrb[0].mxu0
  %200 = vmatprep.mubr.f32.mxu0 0.0
  %201 = vmatmul.mubr.f32.gmra.mrb[0].mxu0 %v116
  %v202 = vpop.f32.mrb[0].mxu0
  %v203 = vadd.f32 0.0, %v202
  %v204 = vpop.f32.mrb[0].mxu0
  %205 = vmatprep.mubr.f32.mxu0 0.0
  %206 = vmatmul.mubr.f32.gmra.mrb[0].mxu0 %v119
  %v207 = vpop.f32.mrb[0].mxu0
  %v208 = vadd.f32 0.0, %v207
  %v209 = vpop.f32.mrb[0].mxu0
  %210 = vmatprep.mubr.f32.mxu0 0.0
  %211 = vmatmul.mubr.f32.gmra.mrb[0].mxu0 %v122
  %v212 = vpop.f32.mrb[0].mxu0
  %v213 = vadd.f32 0.0, %v212
  %v214 = vpop.f32.mrb[0].mxu0
  %215 = vdwg.mxu0
  %217 = vset.pattern.permute.xlu0 0
  %218 = vperm.xlu0 %217, %v98
  %v219 = vpop.permute.xlu0 %218
  %v220 = vsel %vm61, %v219, 0
  %222 = vmatprep.subr.mxu0 0.0
  %223 = vmatpush1.msra.mxu0 %v220
  %224 = vmatprep.subr.mxu0 0.0
  %225 = vmatpush1.msra.mxu0 0.0
  %226 = vmatprep.subr.mxu0 0.0
  %227 = vmatpush1.msra.mxu0 0.0
  %228 = vmatprep.subr.mxu0 0.0
  %229 = vmatpush1.msra.mxu0 0.0
  %230 = vmatprep.subr.mxu0 0.0
  %231 = vmatpush1.msra.mxu0 0.0
  %232 = vmatprep.subr.mxu0 0.0
  %233 = vmatpush1.msra.mxu0 0.0
  %234 = vmatprep.subr.mxu0 0.0
  %235 = vmatpush1.msra.mxu0 0.0
  %236 = vmatprep.subr.mxu0 0.0
  %237 = vmatpush1.msra.mxu0 0.0
  %238 = vmatprep.subr.mxu0 0.0
  %239 = vmatpush1.msra.mxu0 0.0
  %240 = vmatprep.subr.mxu0 0.0
  %241 = vmatpush1.msra.mxu0 0.0
  %242 = vmatprep.subr.mxu0 0.0
  %243 = vmatpush1.msra.mxu0 0.0
  %244 = vmatprep.subr.mxu0 0.0
  %245 = vmatpush1.msra.mxu0 0.0
  %246 = vmatprep.subr.mxu0 0.0
  %247 = vmatpush1.msra.mxu0 0.0
  %248 = vmatprep.subr.mxu0 0.0
  %249 = vmatpush1.msra.mxu0 0.0
  %250 = vmatprep.subr.mxu0 0.0
  %251 = vmatpush1.msra.mxu0 0.0
  %252 = vmatprep.subr.mxu0 0.0
  %253 = vmatpush1.msra.mxu0 0.0
  %254 = vmatprep.subr.mxu0 0.0
  %255 = vmatpush1.msra.mxu0 0.0
  %256 = vmatprep.subr.mxu0 0.0
  %257 = vmatpush1.msra.mxu0 0.0
  %258 = vmatprep.subr.mxu0 0.0
  %259 = vmatpush1.msra.mxu0 0.0
  %260 = vmatprep.subr.mxu0 0.0
  %261 = vmatpush1.msra.mxu0 0.0
  %262 = vmatprep.subr.mxu0 0.0
  %263 = vmatpush1.msra.mxu0 0.0
  %264 = vmatprep.subr.mxu0 0.0
  %265 = vmatpush1.msra.mxu0 0.0
  %266 = vmatprep.subr.mxu0 0.0
  %267 = vmatpush1.msra.mxu0 0.0
  %268 = vmatprep.subr.mxu0 0.0
  %269 = vmatpush1.msra.mxu0 0.0
  %270 = vmatprep.subr.mxu0 0.0
  %271 = vmatpush1.msra.mxu0 0.0
  %272 = vmatprep.subr.mxu0 0.0
  %273 = vmatpush1.msra.mxu0 0.0
  %274 = vmatprep.subr.mxu0 0.0
  %275 = vmatpush1.msra.mxu0 0.0
  %276 = vmatprep.subr.mxu0 0.0
  %277 = vmatpush1.msra.mxu0 0.0
  %278 = vmatprep.subr.mxu0 0.0
  %279 = vmatpush1.msra.mxu0 0.0
  %280 = vmatprep.subr.mxu0 0.0
  %281 = vmatpush1.msra.mxu0 0.0
  %282 = vmatprep.subr.mxu0 0.0
  %283 = vmatpush1.msra.mxu0 0.0
  %284 = vmatprep.subr.mxu0 0.0
  %285 = vmatpush1.msra.mxu0 0.0
  %286 = vmatprep.mubr.f32.mxu0 0.0
  %287 = vmatmul.mubr.f32.gmra.mrb[0].mxu0 %v110
  %v288 = vpop.f32.mrb[0].mxu0
  %v289 = vadd.f32 0.0, %v288
  %v290 = vpop.f32.mrb[0].mxu0
  %291 = vmatprep.mubr.f32.mxu0 0.0
  %292 = vmatmul.mubr.f32.gmra.mrb[0].mxu0 %v113
  %v293 = vpop.f32.mrb[0].mxu0
  %v294 = vadd.f32 0.0, %v293
  %v295 = vpop.f32.mrb[0].mxu0
  %296 = vmatprep.mubr.f32.mxu0 0.0
  %297 = vmatmul.mubr.f32.gmra.mrb[0].mxu0 %v116
  %v298 = vpop.f32.mrb[0].mxu0
  %v299 = vadd.f32 0.0, %v298
  %v300 = vpop.f32.mrb[0].mxu0
  %301 = vmatprep.mubr.f32.mxu0 0.0
  %302 = vmatmul.mubr.f32.gmra.mrb[0].mxu0 %v119
  %v303 = vpop.f32.mrb[0].mxu0
  %v304 = vadd.f32 0.0, %v303
  %v305 = vpop.f32.mrb[0].mxu0
  %306 = vmatprep.mubr.f32.mxu0 0.0
  %307 = vmatmul.mubr.f32.gmra.mrb[0].mxu0 %v122
  %v308 = vpop.f32.mrb[0].mxu0
  %v309 = vadd.f32 0.0, %v308
  %v310 = vpop.f32.mrb[0].mxu0
  %311 = vdwg.mxu0
  %v312 = vld [vmem:[%s2] sm:$0xff]
  %v313 = vld [vmem:[%s2 + $0x8] sm:$0xff]
  %v314 = vld [vmem:[%s2 + $0x10] sm:$0xff]
  %v315 = vld [vmem:[%s2 + $0x18] sm:$0xff]
  %v316 = vld [vmem:[%s2 + $0x20] sm:$0xf]
  %v317 = vld [vmem:[%s1] sm:$0xff]
  %v318 = vld [vmem:[%s1 + $0x8] sm:$0xff]
  %v319 = vld [vmem:[%s1 + $0x10] sm:$0xff]
  %v320 = vld [vmem:[%s1 + $0x18] sm:$0xff]
  %v321 = vld [vmem:[%s1 + $0x20] sm:$0xf]
  %v322 = vmul.f32 %v317, %v193
  %v323 = vmul.f32 %v318, %v198
  %v324 = vmul.f32 %v319, %v203
  %v325 = vmul.f32 %v320, %v208
  %v326 = vmul.f32 %v321, %v213
  %v327 = vadd.f32 %v322, %v289
  %v328 = vadd.f32 %v323, %v294
  %v329 = vadd.f32 %v324, %v299
  %v330 = vadd.f32 %v325, %v304
  %v331 = vadd.f32 %v326, %v309
  %v332 = vmax.f32 %v327, 0.0
  %v333 = vmax.f32 %v328, 0.0
  %v334 = vmax.f32 %v329, 0.0
  %v335 = vmax.f32 %v330, 0.0
  %v336 = vmax.f32 %v331, 0.0
  %v337 = vmul.f32 %v312, %v332
  %v338 = vmul.f32 %v313, %v333
  %v339 = vmul.f32 %v314, %v334
  %v340 = vmul.f32 %v315, %v335
  %v341 = vmul.f32 %v316, %v336
  %v342 = vld [vmem:[%s6] sm:$0xf]
  %v343 = vld [vmem:[%s7] sm:$0xf]
  %345 = vset.pattern.permute.xlu0 0
  %346 = vperm.xlu0 %345, %v343
  %v347 = vpop.permute.xlu0 %346
  %vm349 = vcmask 293888
  %v351 = vsel %vm349, %v342, 0
  %v354 = vsel %vm61, %v341, 0
  %356 = vmatprep.subr.mxu0 0.0
  %357 = vmatpush1.msra.mxu0 %v337
  %358 = vmatprep.subr.mxu0 0.0
  %359 = vmatpush1.msra.mxu0 %v338
  %360 = vmatprep.subr.mxu0 0.0
  %361 = vmatpush1.msra.mxu0 %v339
  %362 = vmatprep.subr.mxu0 0.0
  %363 = vmatpush1.msra.mxu0 %v340
  %364 = vmatprep.subr.mxu0 0.0
  %365 = vmatpush1.msra.mxu0 %v354
  %366 = vmatprep.subr.mxu0 0.0
  %367 = vmatpush1.msra.mxu0 0.0
  %368 = vmatprep.subr.mxu0 0.0
  %369 = vmatpush1.msra.mxu0 0.0
  %370 = vmatprep.subr.mxu0 0.0
  %371 = vmatpush1.msra.mxu0 0.0
  %372 = vmatprep.subr.mxu0 0.0
  %373 = vmatpush1.msra.mxu0 0.0
  %374 = vmatprep.subr.mxu0 0.0
  %375 = vmatpush1.msra.mxu0 0.0
  %376 = vmatprep.subr.mxu0 0.0
  %377 = vmatpush1.msra.mxu0 0.0
  %378 = vmatprep.subr.mxu0 0.0
  %379 = vmatpush1.msra.mxu0 0.0
  %380 = vmatprep.subr.mxu0 0.0
  %381 = vmatpush1.msra.mxu0 0.0
  %382 = vmatprep.subr.mxu0 0.0
  %383 = vmatpush1.msra.mxu0 0.0
  %384 = vmatprep.subr.mxu0 0.0
  %385 = vmatpush1.msra.mxu0 0.0
  %386 = vmatprep.subr.mxu0 0.0
  %387 = vmatpush1.msra.mxu0 0.0
  %388 = vmatprep.subr.mxu0 0.0
  %389 = vmatpush1.msra.mxu0 0.0
  %390 = vmatprep.subr.mxu0 0.0
  %391 = vmatpush1.msra.mxu0 0.0
  %392 = vmatprep.subr.mxu0 0.0
  %393 = vmatpush1.msra.mxu0 0.0
  %394 = vmatprep.subr.mxu0 0.0
  %395 = vmatpush1.msra.mxu0 0.0
  %396 = vmatprep.subr.mxu0 0.0
  %397 = vmatpush1.msra.mxu0 0.0
  %398 = vmatprep.subr.mxu0 0.0
  %399 = vmatpush1.msra.mxu0 0.0
  %400 = vmatprep.subr.mxu0 0.0
  %401 = vmatpush1.msra.mxu0 0.0
  %402 = vmatprep.subr.mxu0 0.0
  %403 = vmatpush1.msra.mxu0 0.0
  %404 = vmatprep.subr.mxu0 0.0
  %405 = vmatpush1.msra.mxu0 0.0
  %406 = vmatprep.subr.mxu0 0.0
  %407 = vmatpush1.msra.mxu0 0.0
  %408 = vmatprep.subr.mxu0 0.0
  %409 = vmatpush1.msra.mxu0 0.0
  %410 = vmatprep.subr.mxu0 0.0
  %411 = vmatpush1.msra.mxu0 0.0
  %412 = vmatprep.subr.mxu0 0.0
  %413 = vmatpush1.msra.mxu0 0.0
  %414 = vmatprep.subr.mxu0 0.0
  %415 = vmatpush1.msra.mxu0 0.0
  %416 = vmatprep.subr.mxu0 0.0
  %417 = vmatpush1.msra.mxu0 0.0
  %418 = vmatprep.subr.mxu0 0.0
  %419 = vmatpush1.msra.mxu0 0.0
  %420 = vmatprep.mubr.f32.mxu0 0.0
  %421 = vmatmul.mubr.f32.gmra.mrb[0].mxu0 %v351
  %v422 = vpop.f32.mrb[0].mxu0
  %v423 = vadd.f32 %v347, %v422
  %v424 = vpop.f32.mrb[0].mxu0
  %425 = vdwg.mxu0
  %v426 = vsel %vm61, %v423, 0.0
  %427 = vadd.xlane.f32.xlu0 %v426
  %v428 = vpop.xlane.xlu0 %427
  %v429 = vmul.f32 %v428, 0.0078125
  %v430 = vmul.f32 %v423, %v423
  %v431 = vsel %vm61, %v430, 0.0
  %432 = vadd.xlane.f32.xlu0 %v431
  %v433 = vpop.xlane.xlu0 %432
  %v434 = vmul.f32 %v433, 0.0078125
  %v435 = vmul.f32 %v429, %v429
  %v436 = vsub.f32 %v434, %v435
  %v437 = vld [vmem:[%s14] sm:$0xf]
  %v438 = vadd.f32 %v436, 1e-05
  %v439 = vrsqrt.pop %v438
  %v440 = vmul.f32 %v437, %v439
  %v441 = vld [vmem:[%s15] sm:$0xf]
  %v442 = vmul.f32 %v429, %v440
  %v443 = vsub.f32 %v441, %v442
  %445 = vset.pattern.permute.xlu0 0
  %446 = vperm.xlu0 %445, %v440
  %v447 = vpop.permute.xlu0 %446
  %v449 = vmul.f32 %v423, %v447
  %451 = vset.pattern.permute.xlu0 0
  %452 = vperm.xlu0 %451, %v443
  %v453 = vpop.permute.xlu0 %452
  %v455 = vadd.f32 %v449, %v453
  %v456 = vmax.f32 %v455, 0.0
  %v457 = vld [vmem:[%s10] sm:$0xf]
  %v458 = vld [vmem:[%s3] sm:$0xff]
  %v459 = vld [vmem:[%s3 + $0x8] sm:$0xff]
  %v460 = vld [vmem:[%s3 + $0x10] sm:$0xff]
  %v461 = vld [vmem:[%s3 + $0x18] sm:$0xff]
  %v462 = vld [vmem:[%s3 + $0x20] sm:$0xf]
  %v463 = vld [vmem:[%s8] sm:$0xff]
  %v464 = vld [vmem:[%s8 + $0x8] sm:$0xff]
  %v465 = vld [vmem:[%s8 + $0x10] sm:$0xff]
  %v466 = vld [vmem:[%s8 + $0x18] sm:$0xff]
  %v467 = vld [vmem:[%s8 + $0x20] sm:$0xf]
  %v469 = vsel %vm108, %v463, 0
  %v472 = vsel %vm108, %v464, 0
  %v475 = vsel %vm108, %v465, 0
  %v478 = vsel %vm108, %v466, 0
  %v481 = vsel %vm108, %v467, 0
  %v484 = vsel %vm61, %v456, 0
  %486 = vmatprep.subr.mxu0 0.0
  %487 = vmatpush1.msra.mxu0 %v484
  %488 = vmatprep.subr.mxu0 0.0
  %489 = vmatpush1.msra.mxu0 0.0
  %490 = vmatprep.subr.mxu0 0.0
  %491 = vmatpush1.msra.mxu0 0.0
  %492 = vmatprep.subr.mxu0 0.0
  %493 = vmatpush1.msra.mxu0 0.0
  %494 = vmatprep.subr.mxu0 0.0
  %495 = vmatpush1.msra.mxu0 0.0
  %496 = vmatprep.subr.mxu0 0.0
  %497 = vmatpush1.msra.mxu0 0.0
  %498 = vmatprep.subr.mxu0 0.0
  %499 = vmatpush1.msra.mxu0 0.0
  %500 = vmatprep.subr.mxu0 0.0
  %501 = vmatpush1.msra.mxu0 0.0
  %502 = vmatprep.subr.mxu0 0.0
  %503 = vmatpush1.msra.mxu0 0.0
  %504 = vmatprep.subr.mxu0 0.0
  %505 = vmatpush1.msra.mxu0 0.0
  %506 = vmatprep.subr.mxu0 0.0
  %507 = vmatpush1.msra.mxu0 0.0
  %508 = vmatprep.subr.mxu0 0.0
  %509 = vmatpush1.msra.mxu0 0.0
  %510 = vmatprep.subr.mxu0 0.0
  %511 = vmatpush1.msra.mxu0 0.0
  %512 = vmatprep.subr.mxu0 0.0
  %513 = vmatpush1.msra.mxu0 0.0
  %514 = vmatprep.subr.mxu0 0.0
  %515 = vmatpush1.msra.mxu0 0.0
  %516 = vmatprep.subr.mxu0 0.0
  %517 = vmatpush1.msra.mxu0 0.0
  %518 = vmatprep.subr.mxu0 0.0
  %519 = vmatpush1.msra.mxu0 0.0
  %520 = vmatprep.subr.mxu0 0.0
  %521 = vmatpush1.msra.mxu0 0.0
  %522 = vmatprep.subr.mxu0 0.0
  %523 = vmatpush1.msra.mxu0 0.0
  %524 = vmatprep.subr.mxu0 0.0
  %525 = vmatpush1.msra.mxu0 0.0
  %526 = vmatprep.subr.mxu0 0.0
  %527 = vmatpush1.msra.mxu0 0.0
  %528 = vmatprep.subr.mxu0 0.0
  %529 = vmatpush1.msra.mxu0 0.0
  %530 = vmatprep.subr.mxu0 0.0
  %531 = vmatpush1.msra.mxu0 0.0
  %532 = vmatprep.subr.mxu0 0.0
  %533 = vmatpush1.msra.mxu0 0.0
  %534 = vmatprep.subr.mxu0 0.0
  %535 = vmatpush1.msra.mxu0 0.0
  %536 = vmatprep.subr.mxu0 0.0
  %537 = vmatpush1.msra.mxu0 0.0
  %538 = vmatprep.subr.mxu0 0.0
  %539 = vmatpush1.msra.mxu0 0.0
  %540 = vmatprep.subr.mxu0 0.0
  %541 = vmatpush1.msra.mxu0 0.0
  %542 = vmatprep.subr.mxu0 0.0
  %543 = vmatpush1.msra.mxu0 0.0
  %544 = vmatprep.subr.mxu0 0.0
  %545 = vmatpush1.msra.mxu0 0.0
  %546 = vmatprep.subr.mxu0 0.0
  %547 = vmatpush1.msra.mxu0 0.0
  %548 = vmatprep.subr.mxu0 0.0
  %549 = vmatpush1.msra.mxu0 0.0
  %550 = vmatprep.mubr.f32.mxu0 0.0
  %551 = vmatmul.mubr.f32.gmra.mrb[0].mxu0 %v469
  %v552 = vpop.f32.mrb[0].mxu0
  %v553 = vadd.f32 0.0, %v552
  %v554 = vpop.f32.mrb[0].mxu0
  %555 = vmatprep.mubr.f32.mxu0 0.0
  %556 = vmatmul.mubr.f32.gmra.mrb[0].mxu0 %v472
  %v557 = vpop.f32.mrb[0].mxu0
  %v558 = vadd.f32 0.0, %v557
  %v559 = vpop.f32.mrb[0].mxu0
  %560 = vmatprep.mubr.f32.mxu0 0.0
  %561 = vmatmul.mubr.f32.gmra.mrb[0].mxu0 %v475
  %v562 = vpop.f32.mrb[0].mxu0
  %v563 = vadd.f32 0.0, %v562
  %v564 = vpop.f32.mrb[0].mxu0
  %565 = vmatprep.mubr.f32.mxu0 0.0
  %566 = vmatmul.mubr.f32.gmra.mrb[0].mxu0 %v478
  %v567 = vpop.f32.mrb[0].mxu0
  %v568 = vadd.f32 0.0, %v567
  %v569 = vpop.f32.mrb[0].mxu0
  %570 = vmatprep.mubr.f32.mxu0 0.0
  %571 = vmatmul.mubr.f32.gmra.mrb[0].mxu0 %v481
  %v572 = vpop.f32.mrb[0].mxu0
  %v573 = vadd.f32 0.0, %v572
  %v574 = vpop.f32.mrb[0].mxu0
  %575 = vdwg.mxu0
  %v576 = vlaneseq
  %v577 = vshrl.u32 %v576, 7
  %v578 = vadd.s32 %v577, 8
  %v579 = vadd.s32 %v577, 16
  %v580 = vadd.s32 %v577, 24
  %v581 = vadd.s32 %v577, 32
  %v582 = vadd.s32 %v577, 40
  %v583 = vadd.s32 %v577, 48
  %v584 = vadd.s32 %v577, 56
  %v585 = vadd.s32 %v577, 64
  %v586 = vadd.s32 %v577, 72
  %v587 = vadd.s32 %v577, 80
  %v588 = vadd.s32 %v577, 88
  %v589 = vadd.s32 %v577, 96
  %v590 = vadd.s32 %v577, 104
  %v591 = vadd.s32 %v577, 112
  %v592 = vadd.s32 %v577, 120
  %v593 = vld [vmem:[%s4] sm:$0x1]
  %v594 = vlaneseq
  %v595 = vshrl.u32 %v594, 7
  %v596 = vsub.s32 0, %v595
  %v597 = vrot.slane %v593, %v596
  %vm598 = vcmp.eq.s32.totalorder %v577, %v597
  %vm599 = vcmp.eq.s32.totalorder %v578, %v597
  %vm600 = vcmp.eq.s32.totalorder %v579, %v597
  %vm601 = vcmp.eq.s32.totalorder %v580, %v597
  %vm602 = vcmp.eq.s32.totalorder %v581, %v597
  %vm603 = vcmp.eq.s32.totalorder %v582, %v597
  %vm604 = vcmp.eq.s32.totalorder %v583, %v597
  %vm605 = vcmp.eq.s32.totalorder %v584, %v597
  %vm606 = vcmp.eq.s32.totalorder %v585, %v597
  %vm607 = vcmp.eq.s32.totalorder %v586, %v597
  %vm608 = vcmp.eq.s32.totalorder %v587, %v597
  %vm609 = vcmp.eq.s32.totalorder %v588, %v597
  %vm610 = vcmp.eq.s32.totalorder %v589, %v597
  %vm611 = vcmp.eq.s32.totalorder %v590, %v597
  %vm612 = vcmp.eq.s32.totalorder %v591, %v597
  %vm613 = vcmp.eq.s32.totalorder %v592, %v597
  %v614 = vsel %vm598, 1.0, 0.0
  %v615 = vsel %vm599, 1.0, 0.0
  %v616 = vsel %vm600, 1.0, 0.0
  %v617 = vsel %vm601, 1.0, 0.0
  %v618 = vsel %vm602, 1.0, 0.0
  %v619 = vsel %vm603, 1.0, 0.0
  %v620 = vsel %vm604, 1.0, 0.0
  %v621 = vsel %vm605, 1.0, 0.0
  %v622 = vsel %vm606, 1.0, 0.0
  %v623 = vsel %vm607, 1.0, 0.0
  %v624 = vsel %vm608, 1.0, 0.0
  %v625 = vsel %vm609, 1.0, 0.0
  %v626 = vsel %vm610, 1.0, 0.0
  %v627 = vsel %vm611, 1.0, 0.0
  %v628 = vsel %vm612, 1.0, 0.0
  %v629 = vsel %vm613, 1.0, 0.0
  %630 = vmatprep.subr.mxu0 0.0
  %631 = vmatpush1.msra.mxu0 %v614
  %632 = vmatprep.subr.mxu0 0.0
  %633 = vmatpush1.msra.mxu0 %v615
  %634 = vmatprep.subr.mxu0 0.0
  %635 = vmatpush1.msra.mxu0 %v616
  %636 = vmatprep.subr.mxu0 0.0
  %637 = vmatpush1.msra.mxu0 %v617
  %638 = vmatprep.subr.mxu0 0.0
  %639 = vmatpush1.msra.mxu0 %v618
  %640 = vmatprep.subr.mxu0 0.0
  %641 = vmatpush1.msra.mxu0 %v619
  %642 = vmatprep.subr.mxu0 0.0
  %643 = vmatpush1.msra.mxu0 %v620
  %644 = vmatprep.subr.mxu0 0.0
  %645 = vmatpush1.msra.mxu0 %v621
  %646 = vmatprep.subr.mxu0 0.0
  %647 = vmatpush1.msra.mxu0 %v622
  %648 = vmatprep.subr.mxu0 0.0
  %649 = vmatpush1.msra.mxu0 %v623
  %650 = vmatprep.subr.mxu0 0.0
  %651 = vmatpush1.msra.mxu0 %v624
  %652 = vmatprep.subr.mxu0 0.0
  %653 = vmatpush1.msra.mxu0 %v625
  %654 = vmatprep.subr.mxu0 0.0
  %655 = vmatpush1.msra.mxu0 %v626
  %656 = vmatprep.subr.mxu0 0.0
  %657 = vmatpush1.msra.mxu0 %v627
  %658 = vmatprep.subr.mxu0 0.0
  %659 = vmatpush1.msra.mxu0 %v628
  %660 = vmatprep.subr.mxu0 0.0
  %661 = vmatpush1.msra.mxu0 %v629
  %662 = vmatprep.subr.mxu0 0.0
  %663 = vmatpush1.msra.mxu0 0.0
  %664 = vmatprep.subr.mxu0 0.0
  %665 = vmatpush1.msra.mxu0 0.0
  %666 = vmatprep.subr.mxu0 0.0
  %667 = vmatpush1.msra.mxu0 0.0
  %668 = vmatprep.subr.mxu0 0.0
  %669 = vmatpush1.msra.mxu0 0.0
  %670 = vmatprep.subr.mxu0 0.0
  %671 = vmatpush1.msra.mxu0 0.0
  %672 = vmatprep.subr.mxu0 0.0
  %673 = vmatpush1.msra.mxu0 0.0
  %674 = vmatprep.subr.mxu0 0.0
  %675 = vmatpush1.msra.mxu0 0.0
  %676 = vmatprep.subr.mxu0 0.0
  %677 = vmatpush1.msra.mxu0 0.0
  %678 = vmatprep.subr.mxu0 0.0
  %679 = vmatpush1.msra.mxu0 0.0
  %680 = vmatprep.subr.mxu0 0.0
  %681 = vmatpush1.msra.mxu0 0.0
  %682 = vmatprep.subr.mxu0 0.0
  %683 = vmatpush1.msra.mxu0 0.0
  %684 = vmatprep.subr.mxu0 0.0
  %685 = vmatpush1.msra.mxu0 0.0
  %686 = vmatprep.subr.mxu0 0.0
  %687 = vmatpush1.msra.mxu0 0.0
  %688 = vmatprep.subr.mxu0 0.0
  %689 = vmatpush1.msra.mxu0 0.0
  %690 = vmatprep.subr.mxu0 0.0
  %691 = vmatpush1.msra.mxu0 0.0
  %692 = vmatprep.subr.mxu0 0.0
  %693 = vmatpush1.msra.mxu0 0.0
  %694 = vmatprep.mubr.f32.mxu0 0.0
  %695 = vmatmul.mubr.f32.gmra.mrb[0].mxu0 %v553
  %v696 = vpop.f32.mrb[0].mxu0
  %v697 = vadd.f32 0.0, %v696
  %v698 = vpop.f32.mrb[0].mxu0
  %699 = vdwg.mxu0
  %v701 = vsel %vm349, %v457, 0
  %v704 = vsel %vm61, %v462, 0
  %706 = vmatprep.subr.mxu0 0.0
  %707 = vmatpush1.msra.mxu0 %v458
  %708 = vmatprep.subr.mxu0 0.0
  %709 = vmatpush1.msra.mxu0 %v459
  %710 = vmatprep.subr.mxu0 0.0
  %711 = vmatpush1.msra.mxu0 %v460
  %712 = vmatprep.subr.mxu0 0.0
  %713 = vmatpush1.msra.mxu0 %v461
  %714 = vmatprep.subr.mxu0 0.0
  %715 = vmatpush1.msra.mxu0 %v704
  %716 = vmatprep.subr.mxu0 0.0
  %717 = vmatpush1.msra.mxu0 0.0
  %718 = vmatprep.subr.mxu0 0.0
  %719 = vmatpush1.msra.mxu0 0.0
  %720 = vmatprep.subr.mxu0 0.0
  %721 = vmatpush1.msra.mxu0 0.0
  %722 = vmatprep.subr.mxu0 0.0
  %723 = vmatpush1.msra.mxu0 0.0
  %724 = vmatprep.subr.mxu0 0.0
  %725 = vmatpush1.msra.mxu0 0.0
  %726 = vmatprep.subr.mxu0 0.0
  %727 = vmatpush1.msra.mxu0 0.0
  %728 = vmatprep.subr.mxu0 0.0
  %729 = vmatpush1.msra.mxu0 0.0
  %730 = vmatprep.subr.mxu0 0.0
  %731 = vmatpush1.msra.mxu0 0.0
  %732 = vmatprep.subr.mxu0 0.0
  %733 = vmatpush1.msra.mxu0 0.0
  %734 = vmatprep.subr.mxu0 0.0
  %735 = vmatpush1.msra.mxu0 0.0
  %736 = vmatprep.subr.mxu0 0.0
  %737 = vmatpush1.msra.mxu0 0.0
  %738 = vmatprep.subr.mxu0 0.0
  %739 = vmatpush1.msra.mxu0 0.0
  %740 = vmatprep.subr.mxu0 0.0
  %741 = vmatpush1.msra.mxu0 0.0
  %742 = vmatprep.subr.mxu0 0.0
  %743 = vmatpush1.msra.mxu0 0.0
  %744 = vmatprep.subr.mxu0 0.0
  %745 = vmatpush1.msra.mxu0 0.0
  %746 = vmatprep.subr.mxu0 0.0
  %747 = vmatpush1.msra.mxu0 0.0
  %748 = vmatprep.subr.mxu0 0.0
  %749 = vmatpush1.msra.mxu0 0.0
  %750 = vmatprep.subr.mxu0 0.0
  %751 = vmatpush1.msra.mxu0 0.0
  %752 = vmatprep.subr.mxu0 0.0
  %753 = vmatpush1.msra.mxu0 0.0
  %754 = vmatprep.subr.mxu0 0.0
  %755 = vmatpush1.msra.mxu0 0.0
  %756 = vmatprep.subr.mxu0 0.0
  %757 = vmatpush1.msra.mxu0 0.0
  %758 = vmatprep.subr.mxu0 0.0
  %759 = vmatpush1.msra.mxu0 0.0
  %760 = vmatprep.subr.mxu0 0.0
  %761 = vmatpush1.msra.mxu0 0.0
  %762 = vmatprep.subr.mxu0 0.0
  %763 = vmatpush1.msra.mxu0 0.0
  %764 = vmatprep.subr.mxu0 0.0
  %765 = vmatpush1.msra.mxu0 0.0
  %766 = vmatprep.subr.mxu0 0.0
  %767 = vmatpush1.msra.mxu0 0.0
  %768 = vmatprep.subr.mxu0 0.0
  %769 = vmatpush1.msra.mxu0 0.0
  %770 = vmatprep.mubr.f32.mxu0 0.0
  %771 = vmatmul.mubr.f32.gmra.mrb[0].mxu0 %v701
  %v772 = vpop.f32.mrb[0].mxu0
  %v773 = vadd.f32 %v697, %v772
  %v774 = vpop.f32.mrb[0].mxu0
  %775 = vdwg.mxu0
  %s776 = scalar_lea.vmem %s4, 1
  %v777 = vld [vmem:[%s776] sm:$0x1]
  %v778 = vlaneseq
  %v779 = vshrl.u32 %v778, 7
  %v780 = vsub.s32 0, %v779
  %v781 = vrot.slane %v777, %v780
  %vm782 = vcmp.eq.s32.totalorder %v577, %v781
  %vm783 = vcmp.eq.s32.totalorder %v578, %v781
  %vm784 = vcmp.eq.s32.totalorder %v579, %v781
  %vm785 = vcmp.eq.s32.totalorder %v580, %v781
  %vm786 = vcmp.eq.s32.totalorder %v581, %v781
  %vm787 = vcmp.eq.s32.totalorder %v582, %v781
  %vm788 = vcmp.eq.s32.totalorder %v583, %v781
  %vm789 = vcmp.eq.s32.totalorder %v584, %v781
  %vm790 = vcmp.eq.s32.totalorder %v585, %v781
  %vm791 = vcmp.eq.s32.totalorder %v586, %v781
  %vm792 = vcmp.eq.s32.totalorder %v587, %v781
  %vm793 = vcmp.eq.s32.totalorder %v588, %v781
  %vm794 = vcmp.eq.s32.totalorder %v589, %v781
  %vm795 = vcmp.eq.s32.totalorder %v590, %v781
  %vm796 = vcmp.eq.s32.totalorder %v591, %v781
  %vm797 = vcmp.eq.s32.totalorder %v592, %v781
  %v798 = vsel %vm782, 1.0, 0.0
  %v799 = vsel %vm783, 1.0, 0.0
  %v800 = vsel %vm784, 1.0, 0.0
  %v801 = vsel %vm785, 1.0, 0.0
  %v802 = vsel %vm786, 1.0, 0.0
  %v803 = vsel %vm787, 1.0, 0.0
  %v804 = vsel %vm788, 1.0, 0.0
  %v805 = vsel %vm789, 1.0, 0.0
  %v806 = vsel %vm790, 1.0, 0.0
  %v807 = vsel %vm791, 1.0, 0.0
  %v808 = vsel %vm792, 1.0, 0.0
  %v809 = vsel %vm793, 1.0, 0.0
  %v810 = vsel %vm794, 1.0, 0.0
  %v811 = vsel %vm795, 1.0, 0.0
  %v812 = vsel %vm796, 1.0, 0.0
  %v813 = vsel %vm797, 1.0, 0.0
  %v815 = vrot.slane %v553, 4
  %817 = vmatprep.subr.mxu0 0.0
  %818 = vmatpush1.msra.mxu0 %v798
  %819 = vmatprep.subr.mxu0 0.0
  %820 = vmatpush1.msra.mxu0 %v799
  %821 = vmatprep.subr.mxu0 0.0
  %822 = vmatpush1.msra.mxu0 %v800
  %823 = vmatprep.subr.mxu0 0.0
  %824 = vmatpush1.msra.mxu0 %v801
  %825 = vmatprep.subr.mxu0 0.0
  %826 = vmatpush1.msra.mxu0 %v802
  %827 = vmatprep.subr.mxu0 0.0
  %828 = vmatpush1.msra.mxu0 %v803
  %829 = vmatprep.subr.mxu0 0.0
  %830 = vmatpush1.msra.mxu0 %v804
  %831 = vmatprep.subr.mxu0 0.0
  %832 = vmatpush1.msra.mxu0 %v805
  %833 = vmatprep.subr.mxu0 0.0
  %834 = vmatpush1.msra.mxu0 %v806
  %835 = vmatprep.subr.mxu0 0.0
  %836 = vmatpush1.msra.mxu0 %v807
  %837 = vmatprep.subr.mxu0 0.0
  %838 = vmatpush1.msra.mxu0 %v808
  %839 = vmatprep.subr.mxu0 0.0
  %840 = vmatpush1.msra.mxu0 %v809
  %841 = vmatprep.subr.mxu0 0.0
  %842 = vmatpush1.msra.mxu0 %v810
  %843 = vmatprep.subr.mxu0 0.0
  %844 = vmatpush1.msra.mxu0 %v811
  %845 = vmatprep.subr.mxu0 0.0
  %846 = vmatpush1.msra.mxu0 %v812
  %847 = vmatprep.subr.mxu0 0.0
  %848 = vmatpush1.msra.mxu0 %v813
  %849 = vmatprep.subr.mxu0 0.0
  %850 = vmatpush1.msra.mxu0 0.0
  %851 = vmatprep.subr.mxu0 0.0
  %852 = vmatpush1.msra.mxu0 0.0
  %853 = vmatprep.subr.mxu0 0.0
  %854 = vmatpush1.msra.mxu0 0.0
  %855 = vmatprep.subr.mxu0 0.0
  %856 = vmatpush1.msra.mxu0 0.0
  %857 = vmatprep.subr.mxu0 0.0
  %858 = vmatpush1.msra.mxu0 0.0
  %859 = vmatprep.subr.mxu0 0.0
  %860 = vmatpush1.msra.mxu0 0.0
  %861 = vmatprep.subr.mxu0 0.0
  %862 = vmatpush1.msra.mxu0 0.0
  %863 = vmatprep.subr.mxu0 0.0
  %864 = vmatpush1.msra.mxu0 0.0
  %865 = vmatprep.subr.mxu0 0.0
  %866 = vmatpush1.msra.mxu0 0.0
  %867 = vmatprep.subr.mxu0 0.0
  %868 = vmatpush1.msra.mxu0 0.0
  %869 = vmatprep.subr.mxu0 0.0
  %870 = vmatpush1.msra.mxu0 0.0
  %871 = vmatprep.subr.mxu0 0.0
  %872 = vmatpush1.msra.mxu0 0.0
  %873 = vmatprep.subr.mxu0 0.0
  %874 = vmatpush1.msra.mxu0 0.0
  %875 = vmatprep.subr.mxu0 0.0
  %876 = vmatpush1.msra.mxu0 0.0
  %877 = vmatprep.subr.mxu0 0.0
  %878 = vmatpush1.msra.mxu0 0.0
  %879 = vmatprep.subr.mxu0 0.0
  %880 = vmatpush1.msra.mxu0 0.0
  %881 = vmatprep.mubr.f32.mxu0 0.0
  %882 = vmatmul.mubr.f32.gmra.mrb[0].mxu0 %v815
  %v883 = vpop.f32.mrb[0].mxu0
  %v884 = vadd.f32 0.0, %v883
  %v885 = vpop.f32.mrb[0].mxu0
  %886 = vdwg.mxu0
  %v887 = vadd.f32 %v773, %v884
  %s888 = scalar_lea.vmem %s4, 2
  %v889 = vld [vmem:[%s888] sm:$0x1]
  %v890 = vlaneseq
  %v891 = vshrl.u32 %v890, 7
  %v892 = vsub.s32 0, %v891
  %v893 = vrot.slane %v889, %v892
  %vm894 = vcmp.eq.s32.totalorder %v577, %v893
  %vm895 = vcmp.eq.s32.totalorder %v578, %v893
  %vm896 = vcmp.eq.s32.totalorder %v579, %v893
  %vm897 = vcmp.eq.s32.totalorder %v580, %v893
  %vm898 = vcmp.eq.s32.totalorder %v581, %v893
  %vm899 = vcmp.eq.s32.totalorder %v582, %v893
  %vm900 = vcmp.eq.s32.totalorder %v583, %v893
  %vm901 = vcmp.eq.s32.totalorder %v584, %v893
  %vm902 = vcmp.eq.s32.totalorder %v585, %v893
  %vm903 = vcmp.eq.s32.totalorder %v586, %v893
  %vm904 = vcmp.eq.s32.totalorder %v587, %v893
  %vm905 = vcmp.eq.s32.totalorder %v588, %v893
  %vm906 = vcmp.eq.s32.totalorder %v589, %v893
  %vm907 = vcmp.eq.s32.totalorder %v590, %v893
  %vm908 = vcmp.eq.s32.totalorder %v591, %v893
  %vm909 = vcmp.eq.s32.totalorder %v592, %v893
  %v910 = vsel %vm894, 1.0, 0.0
  %v911 = vsel %vm895, 1.0, 0.0
  %v912 = vsel %vm896, 1.0, 0.0
  %v913 = vsel %vm897, 1.0, 0.0
  %v914 = vsel %vm898, 1.0, 0.0
  %v915 = vsel %vm899, 1.0, 0.0
  %v916 = vsel %vm900, 1.0, 0.0
  %v917 = vsel %vm901, 1.0, 0.0
  %v918 = vsel %vm902, 1.0, 0.0
  %v919 = vsel %vm903, 1.0, 0.0
  %v920 = vsel %vm904, 1.0, 0.0
  %v921 = vsel %vm905, 1.0, 0.0
  %v922 = vsel %vm906, 1.0, 0.0
  %v923 = vsel %vm907, 1.0, 0.0
  %v924 = vsel %vm908, 1.0, 0.0
  %v925 = vsel %vm909, 1.0, 0.0
  %926 = vmatprep.subr.mxu0 0.0
  %927 = vmatpush1.msra.mxu0 %v910
  %928 = vmatprep.subr.mxu0 0.0
  %929 = vmatpush1.msra.mxu0 %v911
  %930 = vmatprep.subr.mxu0 0.0
  %931 = vmatpush1.msra.mxu0 %v912
  %932 = vmatprep.subr.mxu0 0.0
  %933 = vmatpush1.msra.mxu0 %v913
  %934 = vmatprep.subr.mxu0 0.0
  %935 = vmatpush1.msra.mxu0 %v914
  %936 = vmatprep.subr.mxu0 0.0
  %937 = vmatpush1.msra.mxu0 %v915
  %938 = vmatprep.subr.mxu0 0.0
  %939 = vmatpush1.msra.mxu0 %v916
  %940 = vmatprep.subr.mxu0 0.0
  %941 = vmatpush1.msra.mxu0 %v917
  %942 = vmatprep.subr.mxu0 0.0
  %943 = vmatpush1.msra.mxu0 %v918
  %944 = vmatprep.subr.mxu0 0.0
  %945 = vmatpush1.msra.mxu0 %v919
  %946 = vmatprep.subr.mxu0 0.0
  %947 = vmatpush1.msra.mxu0 %v920
  %948 = vmatprep.subr.mxu0 0.0
  %949 = vmatpush1.msra.mxu0 %v921
  %950 = vmatprep.subr.mxu0 0.0
  %951 = vmatpush1.msra.mxu0 %v922
  %952 = vmatprep.subr.mxu0 0.0
  %953 = vmatpush1.msra.mxu0 %v923
  %954 = vmatprep.subr.mxu0 0.0
  %955 = vmatpush1.msra.mxu0 %v924
  %956 = vmatprep.subr.mxu0 0.0
  %957 = vmatpush1.msra.mxu0 %v925
  %958 = vmatprep.subr.mxu0 0.0
  %959 = vmatpush1.msra.mxu0 0.0
  %960 = vmatprep.subr.mxu0 0.0
  %961 = vmatpush1.msra.mxu0 0.0
  %962 = vmatprep.subr.mxu0 0.0
  %963 = vmatpush1.msra.mxu0 0.0
  %964 = vmatprep.subr.mxu0 0.0
  %965 = vmatpush1.msra.mxu0 0.0
  %966 = vmatprep.subr.mxu0 0.0
  %967 = vmatpush1.msra.mxu0 0.0
  %968 = vmatprep.subr.mxu0 0.0
  %969 = vmatpush1.msra.mxu0 0.0
  %970 = vmatprep.subr.mxu0 0.0
  %971 = vmatpush1.msra.mxu0 0.0
  %972 = vmatprep.subr.mxu0 0.0
  %973 = vmatpush1.msra.mxu0 0.0
  %974 = vmatprep.subr.mxu0 0.0
  %975 = vmatpush1.msra.mxu0 0.0
  %976 = vmatprep.subr.mxu0 0.0
  %977 = vmatpush1.msra.mxu0 0.0
  %978 = vmatprep.subr.mxu0 0.0
  %979 = vmatpush1.msra.mxu0 0.0
  %980 = vmatprep.subr.mxu0 0.0
  %981 = vmatpush1.msra.mxu0 0.0
  %982 = vmatprep.subr.mxu0 0.0
  %983 = vmatpush1.msra.mxu0 0.0
  %984 = vmatprep.subr.mxu0 0.0
  %985 = vmatpush1.msra.mxu0 0.0
  %986 = vmatprep.subr.mxu0 0.0
  %987 = vmatpush1.msra.mxu0 0.0
  %988 = vmatprep.subr.mxu0 0.0
  %989 = vmatpush1.msra.mxu0 0.0
  %990 = vmatprep.mubr.f32.mxu0 0.0
  %991 = vmatmul.mubr.f32.gmra.mrb[0].mxu0 %v558
  %v992 = vpop.f32.mrb[0].mxu0
  %v993 = vadd.f32 0.0, %v992
  %v994 = vpop.f32.mrb[0].mxu0
  %995 = vdwg.mxu0
  %v996 = vadd.f32 %v887, %v993
  %s997 = scalar_lea.vmem %s4, 3
  %v998 = vld [vmem:[%s997] sm:$0x1]
  %v999 = vlaneseq
  %v1000 = vshrl.u32 %v999, 7
  %v1001 = vsub.s32 0, %v1000
  %v1002 = vrot.slane %v998, %v1001
  %vm1003 = vcmp.eq.s32.totalorder %v577, %v1002
  %vm1004 = vcmp.eq.s32.totalorder %v578, %v1002
  %vm1005 = vcmp.eq.s32.totalorder %v579, %v1002
  %vm1006 = vcmp.eq.s32.totalorder %v580, %v1002
  %vm1007 = vcmp.eq.s32.totalorder %v581, %v1002
  %vm1008 = vcmp.eq.s32.totalorder %v582, %v1002
  %vm1009 = vcmp.eq.s32.totalorder %v583, %v1002
  %vm1010 = vcmp.eq.s32.totalorder %v584, %v1002
  %vm1011 = vcmp.eq.s32.totalorder %v585, %v1002
  %vm1012 = vcmp.eq.s32.totalorder %v586, %v1002
  %vm1013 = vcmp.eq.s32.totalorder %v587, %v1002
  %vm1014 = vcmp.eq.s32.totalorder %v588, %v1002
  %vm1015 = vcmp.eq.s32.totalorder %v589, %v1002
  %vm1016 = vcmp.eq.s32.totalorder %v590, %v1002
  %vm1017 = vcmp.eq.s32.totalorder %v591, %v1002
  %vm1018 = vcmp.eq.s32.totalorder %v592, %v1002
  %v1019 = vsel %vm1003, 1.0, 0.0
  %v1020 = vsel %vm1004, 1.0, 0.0
  %v1021 = vsel %vm1005, 1.0, 0.0
  %v1022 = vsel %vm1006, 1.0, 0.0
  %v1023 = vsel %vm1007, 1.0, 0.0
  %v1024 = vsel %vm1008, 1.0, 0.0
  %v1025 = vsel %vm1009, 1.0, 0.0
  %v1026 = vsel %vm1010, 1.0, 0.0
  %v1027 = vsel %vm1011, 1.0, 0.0
  %v1028 = vsel %vm1012, 1.0, 0.0
  %v1029 = vsel %vm1013, 1.0, 0.0
  %v1030 = vsel %vm1014, 1.0, 0.0
  %v1031 = vsel %vm1015, 1.0, 0.0
  %v1032 = vsel %vm1016, 1.0, 0.0
  %v1033 = vsel %vm1017, 1.0, 0.0
  %v1034 = vsel %vm1018, 1.0, 0.0
  %v1036 = vrot.slane %v558, 4
  %1038 = vmatprep.subr.mxu0 0.0
  %1039 = vmatpush1.msra.mxu0 %v1019
  %1040 = vmatprep.subr.mxu0 0.0
  %1041 = vmatpush1.msra.mxu0 %v1020
  %1042 = vmatprep.subr.mxu0 0.0
  %1043 = vmatpush1.msra.mxu0 %v1021
  %1044 = vmatprep.subr.mxu0 0.0
  %1045 = vmatpush1.msra.mxu0 %v1022
  %1046 = vmatprep.subr.mxu0 0.0
  %1047 = vmatpush1.msra.mxu0 %v1023
  %1048 = vmatprep.subr.mxu0 0.0
  %1049 = vmatpush1.msra.mxu0 %v1024
  %1050 = vmatprep.subr.mxu0 0.0
  %1051 = vmatpush1.msra.mxu0 %v1025
  %1052 = vmatprep.subr.mxu0 0.0
  %1053 = vmatpush1.msra.mxu0 %v1026
  %1054 = vmatprep.subr.mxu0 0.0
  %1055 = vmatpush1.msra.mxu0 %v1027
  %1056 = vmatprep.subr.mxu0 0.0
  %1057 = vmatpush1.msra.mxu0 %v1028
  %1058 = vmatprep.subr.mxu0 0.0
  %1059 = vmatpush1.msra.mxu0 %v1029
  %1060 = vmatprep.subr.mxu0 0.0
  %1061 = vmatpush1.msra.mxu0 %v1030
  %1062 = vmatprep.subr.mxu0 0.0
  %1063 = vmatpush1.msra.mxu0 %v1031
  %1064 = vmatprep.subr.mxu0 0.0
  %1065 = vmatpush1.msra.mxu0 %v1032
  %1066 = vmatprep.subr.mxu0 0.0
  %1067 = vmatpush1.msra.mxu0 %v1033
  %1068 = vmatprep.subr.mxu0 0.0
  %1069 = vmatpush1.msra.mxu0 %v1034
  %1070 = vmatprep.subr.mxu0 0.0
  %1071 = vmatpush1.msra.mxu0 0.0
  %1072 = vmatprep.subr.mxu0 0.0
  %1073 = vmatpush1.msra.mxu0 0.0
  %1074 = vmatprep.subr.mxu0 0.0
  %1075 = vmatpush1.msra.mxu0 0.0
  %1076 = vmatprep.subr.mxu0 0.0
  %1077 = vmatpush1.msra.mxu0 0.0
  %1078 = vmatprep.subr.mxu0 0.0
  %1079 = vmatpush1.msra.mxu0 0.0
  %1080 = vmatprep.subr.mxu0 0.0
  %1081 = vmatpush1.msra.mxu0 0.0
  %1082 = vmatprep.subr.mxu0 0.0
  %1083 = vmatpush1.msra.mxu0 0.0
  %1084 = vmatprep.subr.mxu0 0.0
  %1085 = vmatpush1.msra.mxu0 0.0
  %1086 = vmatprep.subr.mxu0 0.0
  %1087 = vmatpush1.msra.mxu0 0.0
  %1088 = vmatprep.subr.mxu0 0.0
  %1089 = vmatpush1.msra.mxu0 0.0
  %1090 = vmatprep.subr.mxu0 0.0
  %1091 = vmatpush1.msra.mxu0 0.0
  %1092 = vmatprep.subr.mxu0 0.0
  %1093 = vmatpush1.msra.mxu0 0.0
  %1094 = vmatprep.subr.mxu0 0.0
  %1095 = vmatpush1.msra.mxu0 0.0
  %1096 = vmatprep.subr.mxu0 0.0
  %1097 = vmatpush1.msra.mxu0 0.0
  %1098 = vmatprep.subr.mxu0 0.0
  %1099 = vmatpush1.msra.mxu0 0.0
  %1100 = vmatprep.subr.mxu0 0.0
  %1101 = vmatpush1.msra.mxu0 0.0
  %1102 = vmatprep.mubr.f32.mxu0 0.0
  %1103 = vmatmul.mubr.f32.gmra.mrb[0].mxu0 %v1036
  %v1104 = vpop.f32.mrb[0].mxu0
  %v1105 = vadd.f32 0.0, %v1104
  %v1106 = vpop.f32.mrb[0].mxu0
  %1107 = vdwg.mxu0
  %v1108 = vadd.f32 %v996, %v1105
  %s1109 = scalar_lea.vmem %s4, 4
  %v1110 = vld [vmem:[%s1109] sm:$0x1]
  %v1111 = vlaneseq
  %v1112 = vshrl.u32 %v1111, 7
  %v1113 = vsub.s32 0, %v1112
  %v1114 = vrot.slane %v1110, %v1113
  %vm1115 = vcmp.eq.s32.totalorder %v577, %v1114
  %vm1116 = vcmp.eq.s32.totalorder %v578, %v1114
  %vm1117 = vcmp.eq.s32.totalorder %v579, %v1114
  %vm1118 = vcmp.eq.s32.totalorder %v580, %v1114
  %vm1119 = vcmp.eq.s32.totalorder %v581, %v1114
  %vm1120 = vcmp.eq.s32.totalorder %v582, %v1114
  %vm1121 = vcmp.eq.s32.totalorder %v583, %v1114
  %vm1122 = vcmp.eq.s32.totalorder %v584, %v1114
  %vm1123 = vcmp.eq.s32.totalorder %v585, %v1114
  %vm1124 = vcmp.eq.s32.totalorder %v586, %v1114
  %vm1125 = vcmp.eq.s32.totalorder %v587, %v1114
  %vm1126 = vcmp.eq.s32.totalorder %v588, %v1114
  %vm1127 = vcmp.eq.s32.totalorder %v589, %v1114
  %vm1128 = vcmp.eq.s32.totalorder %v590, %v1114
  %vm1129 = vcmp.eq.s32.totalorder %v591, %v1114
  %vm1130 = vcmp.eq.s32.totalorder %v592, %v1114
  %v1131 = vsel %vm1115, 1.0, 0.0
  %v1132 = vsel %vm1116, 1.0, 0.0
  %v1133 = vsel %vm1117, 1.0, 0.0
  %v1134 = vsel %vm1118, 1.0, 0.0
  %v1135 = vsel %vm1119, 1.0, 0.0
  %v1136 = vsel %vm1120, 1.0, 0.0
  %v1137 = vsel %vm1121, 1.0, 0.0
  %v1138 = vsel %vm1122, 1.0, 0.0
  %v1139 = vsel %vm1123, 1.0, 0.0
  %v1140 = vsel %vm1124, 1.0, 0.0
  %v1141 = vsel %vm1125, 1.0, 0.0
  %v1142 = vsel %vm1126, 1.0, 0.0
  %v1143 = vsel %vm1127, 1.0, 0.0
  %v1144 = vsel %vm1128, 1.0, 0.0
  %v1145 = vsel %vm1129, 1.0, 0.0
  %v1146 = vsel %vm1130, 1.0, 0.0
  %1147 = vmatprep.subr.mxu0 0.0
  %1148 = vmatpush1.msra.mxu0 %v1131
  %1149 = vmatprep.subr.mxu0 0.0
  %1150 = vmatpush1.msra.mxu0 %v1132
  %1151 = vmatprep.subr.mxu0 0.0
  %1152 = vmatpush1.msra.mxu0 %v1133
  %1153 = vmatprep.subr.mxu0 0.0
  %1154 = vmatpush1.msra.mxu0 %v1134
  %1155 = vmatprep.subr.mxu0 0.0
  %1156 = vmatpush1.msra.mxu0 %v1135
  %1157 = vmatprep.subr.mxu0 0.0
  %1158 = vmatpush1.msra.mxu0 %v1136
  %1159 = vmatprep.subr.mxu0 0.0
  %1160 = vmatpush1.msra.mxu0 %v1137
  %1161 = vmatprep.subr.mxu0 0.0
  %1162 = vmatpush1.msra.mxu0 %v1138
  %1163 = vmatprep.subr.mxu0 0.0
  %1164 = vmatpush1.msra.mxu0 %v1139
  %1165 = vmatprep.subr.mxu0 0.0
  %1166 = vmatpush1.msra.mxu0 %v1140
  %1167 = vmatprep.subr.mxu0 0.0
  %1168 = vmatpush1.msra.mxu0 %v1141
  %1169 = vmatprep.subr.mxu0 0.0
  %1170 = vmatpush1.msra.mxu0 %v1142
  %1171 = vmatprep.subr.mxu0 0.0
  %1172 = vmatpush1.msra.mxu0 %v1143
  %1173 = vmatprep.subr.mxu0 0.0
  %1174 = vmatpush1.msra.mxu0 %v1144
  %1175 = vmatprep.subr.mxu0 0.0
  %1176 = vmatpush1.msra.mxu0 %v1145
  %1177 = vmatprep.subr.mxu0 0.0
  %1178 = vmatpush1.msra.mxu0 %v1146
  %1179 = vmatprep.subr.mxu0 0.0
  %1180 = vmatpush1.msra.mxu0 0.0
  %1181 = vmatprep.subr.mxu0 0.0
  %1182 = vmatpush1.msra.mxu0 0.0
  %1183 = vmatprep.subr.mxu0 0.0
  %1184 = vmatpush1.msra.mxu0 0.0
  %1185 = vmatprep.subr.mxu0 0.0
  %1186 = vmatpush1.msra.mxu0 0.0
  %1187 = vmatprep.subr.mxu0 0.0
  %1188 = vmatpush1.msra.mxu0 0.0
  %1189 = vmatprep.subr.mxu0 0.0
  %1190 = vmatpush1.msra.mxu0 0.0
  %1191 = vmatprep.subr.mxu0 0.0
  %1192 = vmatpush1.msra.mxu0 0.0
  %1193 = vmatprep.subr.mxu0 0.0
  %1194 = vmatpush1.msra.mxu0 0.0
  %1195 = vmatprep.subr.mxu0 0.0
  %1196 = vmatpush1.msra.mxu0 0.0
  %1197 = vmatprep.subr.mxu0 0.0
  %1198 = vmatpush1.msra.mxu0 0.0
  %1199 = vmatprep.subr.mxu0 0.0
  %1200 = vmatpush1.msra.mxu0 0.0
  %1201 = vmatprep.subr.mxu0 0.0
  %1202 = vmatpush1.msra.mxu0 0.0
  %1203 = vmatprep.subr.mxu0 0.0
  %1204 = vmatpush1.msra.mxu0 0.0
  %1205 = vmatprep.subr.mxu0 0.0
  %1206 = vmatpush1.msra.mxu0 0.0
  %1207 = vmatprep.subr.mxu0 0.0
  %1208 = vmatpush1.msra.mxu0 0.0
  %1209 = vmatprep.subr.mxu0 0.0
  %1210 = vmatpush1.msra.mxu0 0.0
  %1211 = vmatprep.mubr.f32.mxu0 0.0
  %1212 = vmatmul.mubr.f32.gmra.mrb[0].mxu0 %v563
  %v1213 = vpop.f32.mrb[0].mxu0
  %v1214 = vadd.f32 0.0, %v1213
  %v1215 = vpop.f32.mrb[0].mxu0
  %1216 = vdwg.mxu0
  %v1217 = vadd.f32 %v1108, %v1214
  %s1218 = scalar_lea.vmem %s4, 5
  %v1219 = vld [vmem:[%s1218] sm:$0x1]
  %v1220 = vlaneseq
  %v1221 = vshrl.u32 %v1220, 7
  %v1222 = vsub.s32 0, %v1221
  %v1223 = vrot.slane %v1219, %v1222
  %vm1224 = vcmp.eq.s32.totalorder %v577, %v1223
  %vm1225 = vcmp.eq.s32.totalorder %v578, %v1223
  %vm1226 = vcmp.eq.s32.totalorder %v579, %v1223
  %vm1227 = vcmp.eq.s32.totalorder %v580, %v1223
  %vm1228 = vcmp.eq.s32.totalorder %v581, %v1223
  %vm1229 = vcmp.eq.s32.totalorder %v582, %v1223
  %vm1230 = vcmp.eq.s32.totalorder %v583, %v1223
  %vm1231 = vcmp.eq.s32.totalorder %v584, %v1223
  %vm1232 = vcmp.eq.s32.totalorder %v585, %v1223
  %vm1233 = vcmp.eq.s32.totalorder %v586, %v1223
  %vm1234 = vcmp.eq.s32.totalorder %v587, %v1223
  %vm1235 = vcmp.eq.s32.totalorder %v588, %v1223
  %vm1236 = vcmp.eq.s32.totalorder %v589, %v1223
  %vm1237 = vcmp.eq.s32.totalorder %v590, %v1223
  %vm1238 = vcmp.eq.s32.totalorder %v591, %v1223
  %vm1239 = vcmp.eq.s32.totalorder %v592, %v1223
  %v1240 = vsel %vm1224, 1.0, 0.0
  %v1241 = vsel %vm1225, 1.0, 0.0
  %v1242 = vsel %vm1226, 1.0, 0.0
  %v1243 = vsel %vm1227, 1.0, 0.0
  %v1244 = vsel %vm1228, 1.0, 0.0
  %v1245 = vsel %vm1229, 1.0, 0.0
  %v1246 = vsel %vm1230, 1.0, 0.0
  %v1247 = vsel %vm1231, 1.0, 0.0
  %v1248 = vsel %vm1232, 1.0, 0.0
  %v1249 = vsel %vm1233, 1.0, 0.0
  %v1250 = vsel %vm1234, 1.0, 0.0
  %v1251 = vsel %vm1235, 1.0, 0.0
  %v1252 = vsel %vm1236, 1.0, 0.0
  %v1253 = vsel %vm1237, 1.0, 0.0
  %v1254 = vsel %vm1238, 1.0, 0.0
  %v1255 = vsel %vm1239, 1.0, 0.0
  %v1257 = vrot.slane %v563, 4
  %1259 = vmatprep.subr.mxu0 0.0
  %1260 = vmatpush1.msra.mxu0 %v1240
  %1261 = vmatprep.subr.mxu0 0.0
  %1262 = vmatpush1.msra.mxu0 %v1241
  %1263 = vmatprep.subr.mxu0 0.0
  %1264 = vmatpush1.msra.mxu0 %v1242
  %1265 = vmatprep.subr.mxu0 0.0
  %1266 = vmatpush1.msra.mxu0 %v1243
  %1267 = vmatprep.subr.mxu0 0.0
  %1268 = vmatpush1.msra.mxu0 %v1244
  %1269 = vmatprep.subr.mxu0 0.0
  %1270 = vmatpush1.msra.mxu0 %v1245
  %1271 = vmatprep.subr.mxu0 0.0
  %1272 = vmatpush1.msra.mxu0 %v1246
  %1273 = vmatprep.subr.mxu0 0.0
  %1274 = vmatpush1.msra.mxu0 %v1247
  %1275 = vmatprep.subr.mxu0 0.0
  %1276 = vmatpush1.msra.mxu0 %v1248
  %1277 = vmatprep.subr.mxu0 0.0
  %1278 = vmatpush1.msra.mxu0 %v1249
  %1279 = vmatprep.subr.mxu0 0.0
  %1280 = vmatpush1.msra.mxu0 %v1250
  %1281 = vmatprep.subr.mxu0 0.0
  %1282 = vmatpush1.msra.mxu0 %v1251
  %1283 = vmatprep.subr.mxu0 0.0
  %1284 = vmatpush1.msra.mxu0 %v1252
  %1285 = vmatprep.subr.mxu0 0.0
  %1286 = vmatpush1.msra.mxu0 %v1253
  %1287 = vmatprep.subr.mxu0 0.0
  %1288 = vmatpush1.msra.mxu0 %v1254
  %1289 = vmatprep.subr.mxu0 0.0
  %1290 = vmatpush1.msra.mxu0 %v1255
  %1291 = vmatprep.subr.mxu0 0.0
  %1292 = vmatpush1.msra.mxu0 0.0
  %1293 = vmatprep.subr.mxu0 0.0
  %1294 = vmatpush1.msra.mxu0 0.0
  %1295 = vmatprep.subr.mxu0 0.0
  %1296 = vmatpush1.msra.mxu0 0.0
  %1297 = vmatprep.subr.mxu0 0.0
  %1298 = vmatpush1.msra.mxu0 0.0
  %1299 = vmatprep.subr.mxu0 0.0
  %1300 = vmatpush1.msra.mxu0 0.0
  %1301 = vmatprep.subr.mxu0 0.0
  %1302 = vmatpush1.msra.mxu0 0.0
  %1303 = vmatprep.subr.mxu0 0.0
  %1304 = vmatpush1.msra.mxu0 0.0
  %1305 = vmatprep.subr.mxu0 0.0
  %1306 = vmatpush1.msra.mxu0 0.0
  %1307 = vmatprep.subr.mxu0 0.0
  %1308 = vmatpush1.msra.mxu0 0.0
  %1309 = vmatprep.subr.mxu0 0.0
  %1310 = vmatpush1.msra.mxu0 0.0
  %1311 = vmatprep.subr.mxu0 0.0
  %1312 = vmatpush1.msra.mxu0 0.0
  %1313 = vmatprep.subr.mxu0 0.0
  %1314 = vmatpush1.msra.mxu0 0.0
  %1315 = vmatprep.subr.mxu0 0.0
  %1316 = vmatpush1.msra.mxu0 0.0
  %1317 = vmatprep.subr.mxu0 0.0
  %1318 = vmatpush1.msra.mxu0 0.0
  %1319 = vmatprep.subr.mxu0 0.0
  %1320 = vmatpush1.msra.mxu0 0.0
  %1321 = vmatprep.subr.mxu0 0.0
  %1322 = vmatpush1.msra.mxu0 0.0
  %1323 = vmatprep.mubr.f32.mxu0 0.0
  %1324 = vmatmul.mubr.f32.gmra.mrb[0].mxu0 %v1257
  %v1325 = vpop.f32.mrb[0].mxu0
  %v1326 = vadd.f32 0.0, %v1325
  %v1327 = vpop.f32.mrb[0].mxu0
  %1328 = vdwg.mxu0
  %v1329 = vadd.f32 %v1217, %v1326
  %s1330 = scalar_lea.vmem %s4, 6
  %v1331 = vld [vmem:[%s1330] sm:$0x1]
  %v1332 = vlaneseq
  %v1333 = vshrl.u32 %v1332, 7
  %v1334 = vsub.s32 0, %v1333
  %v1335 = vrot.slane %v1331, %v1334
  %vm1336 = vcmp.eq.s32.totalorder %v577, %v1335
  %vm1337 = vcmp.eq.s32.totalorder %v578, %v1335
  %vm1338 = vcmp.eq.s32.totalorder %v579, %v1335
  %vm1339 = vcmp.eq.s32.totalorder %v580, %v1335
  %vm1340 = vcmp.eq.s32.totalorder %v581, %v1335
  %vm1341 = vcmp.eq.s32.totalorder %v582, %v1335
  %vm1342 = vcmp.eq.s32.totalorder %v583, %v1335
  %vm1343 = vcmp.eq.s32.totalorder %v584, %v1335
  %vm1344 = vcmp.eq.s32.totalorder %v585, %v1335
  %vm1345 = vcmp.eq.s32.totalorder %v586, %v1335
  %vm1346 = vcmp.eq.s32.totalorder %v587, %v1335
  %vm1347 = vcmp.eq.s32.totalorder %v588, %v1335
  %vm1348 = vcmp.eq.s32.totalorder %v589, %v1335
  %vm1349 = vcmp.eq.s32.totalorder %v590, %v1335
  %vm1350 = vcmp.eq.s32.totalorder %v591, %v1335
  %vm1351 = vcmp.eq.s32.totalorder %v592, %v1335
  %v1352 = vsel %vm1336, 1.0, 0.0
  %v1353 = vsel %vm1337, 1.0, 0.0
  %v1354 = vsel %vm1338, 1.0, 0.0
  %v1355 = vsel %vm1339, 1.0, 0.0
  %v1356 = vsel %vm1340, 1.0, 0.0
  %v1357 = vsel %vm1341, 1.0, 0.0
  %v1358 = vsel %vm1342, 1.0, 0.0
  %v1359 = vsel %vm1343, 1.0, 0.0
  %v1360 = vsel %vm1344, 1.0, 0.0
  %v1361 = vsel %vm1345, 1.0, 0.0
  %v1362 = vsel %vm1346, 1.0, 0.0
  %v1363 = vsel %vm1347, 1.0, 0.0
  %v1364 = vsel %vm1348, 1.0, 0.0
  %v1365 = vsel %vm1349, 1.0, 0.0
  %v1366 = vsel %vm1350, 1.0, 0.0
  %v1367 = vsel %vm1351, 1.0, 0.0
  %1368 = vmatprep.subr.mxu0 0.0
  %1369 = vmatpush1.msra.mxu0 %v1352
  %1370 = vmatprep.subr.mxu0 0.0
  %1371 = vmatpush1.msra.mxu0 %v1353
  %1372 = vmatprep.subr.mxu0 0.0
  %1373 = vmatpush1.msra.mxu0 %v1354
  %1374 = vmatprep.subr.mxu0 0.0
  %1375 = vmatpush1.msra.mxu0 %v1355
  %1376 = vmatprep.subr.mxu0 0.0
  %1377 = vmatpush1.msra.mxu0 %v1356
  %1378 = vmatprep.subr.mxu0 0.0
  %1379 = vmatpush1.msra.mxu0 %v1357
  %1380 = vmatprep.subr.mxu0 0.0
  %1381 = vmatpush1.msra.mxu0 %v1358
  %1382 = vmatprep.subr.mxu0 0.0
  %1383 = vmatpush1.msra.mxu0 %v1359
  %1384 = vmatprep.subr.mxu0 0.0
  %1385 = vmatpush1.msra.mxu0 %v1360
  %1386 = vmatprep.subr.mxu0 0.0
  %1387 = vmatpush1.msra.mxu0 %v1361
  %1388 = vmatprep.subr.mxu0 0.0
  %1389 = vmatpush1.msra.mxu0 %v1362
  %1390 = vmatprep.subr.mxu0 0.0
  %1391 = vmatpush1.msra.mxu0 %v1363
  %1392 = vmatprep.subr.mxu0 0.0
  %1393 = vmatpush1.msra.mxu0 %v1364
  %1394 = vmatprep.subr.mxu0 0.0
  %1395 = vmatpush1.msra.mxu0 %v1365
  %1396 = vmatprep.subr.mxu0 0.0
  %1397 = vmatpush1.msra.mxu0 %v1366
  %1398 = vmatprep.subr.mxu0 0.0
  %1399 = vmatpush1.msra.mxu0 %v1367
  %1400 = vmatprep.subr.mxu0 0.0
  %1401 = vmatpush1.msra.mxu0 0.0
  %1402 = vmatprep.subr.mxu0 0.0
  %1403 = vmatpush1.msra.mxu0 0.0
  %1404 = vmatprep.subr.mxu0 0.0
  %1405 = vmatpush1.msra.mxu0 0.0
  %1406 = vmatprep.subr.mxu0 0.0
  %1407 = vmatpush1.msra.mxu0 0.0
  %1408 = vmatprep.subr.mxu0 0.0
  %1409 = vmatpush1.msra.mxu0 0.0
  %1410 = vmatprep.subr.mxu0 0.0
  %1411 = vmatpush1.msra.mxu0 0.0
  %1412 = vmatprep.subr.mxu0 0.0
  %1413 = vmatpush1.msra.mxu0 0.0
  %1414 = vmatprep.subr.mxu0 0.0
  %1415 = vmatpush1.msra.mxu0 0.0
  %1416 = vmatprep.subr.mxu0 0.0
  %1417 = vmatpush1.msra.mxu0 0.0
  %1418 = vmatprep.subr.mxu0 0.0
  %1419 = vmatpush1.msra.mxu0 0.0
  %1420 = vmatprep.subr.mxu0 0.0
  %1421 = vmatpush1.msra.mxu0 0.0
  %1422 = vmatprep.subr.mxu0 0.0
  %1423 = vmatpush1.msra.mxu0 0.0
  %1424 = vmatprep.subr.mxu0 0.0
  %1425 = vmatpush1.msra.mxu0 0.0
  %1426 = vmatprep.subr.mxu0 0.0
  %1427 = vmatpush1.msra.mxu0 0.0
  %1428 = vmatprep.subr.mxu0 0.0
  %1429 = vmatpush1.msra.mxu0 0.0
  %1430 = vmatprep.subr.mxu0 0.0
  %1431 = vmatpush1.msra.mxu0 0.0
  %1432 = vmatprep.mubr.f32.mxu0 0.0
  %1433 = vmatmul.mubr.f32.gmra.mrb[0].mxu0 %v568
  %v1434 = vpop.f32.mrb[0].mxu0
  %v1435 = vadd.f32 0.0, %v1434
  %v1436 = vpop.f32.mrb[0].mxu0
  %1437 = vdwg.mxu0
  %v1438 = vadd.f32 %v1329, %v1435
  %s1439 = scalar_lea.vmem %s4, 7
  %v1440 = vld [vmem:[%s1439] sm:$0x1]
  %v1441 = vlaneseq
  %v1442 = vshrl.u32 %v1441, 7
  %v1443 = vsub.s32 0, %v1442
  %v1444 = vrot.slane %v1440, %v1443
  %vm1445 = vcmp.eq.s32.totalorder %v577, %v1444
  %vm1446 = vcmp.eq.s32.totalorder %v578, %v1444
  %vm1447 = vcmp.eq.s32.totalorder %v579, %v1444
  %vm1448 = vcmp.eq.s32.totalorder %v580, %v1444
  %vm1449 = vcmp.eq.s32.totalorder %v581, %v1444
  %vm1450 = vcmp.eq.s32.totalorder %v582, %v1444
  %vm1451 = vcmp.eq.s32.totalorder %v583, %v1444
  %vm1452 = vcmp.eq.s32.totalorder %v584, %v1444
  %vm1453 = vcmp.eq.s32.totalorder %v585, %v1444
  %vm1454 = vcmp.eq.s32.totalorder %v586, %v1444
  %vm1455 = vcmp.eq.s32.totalorder %v587, %v1444
  %vm1456 = vcmp.eq.s32.totalorder %v588, %v1444
  %vm1457 = vcmp.eq.s32.totalorder %v589, %v1444
  %vm1458 = vcmp.eq.s32.totalorder %v590, %v1444
  %vm1459 = vcmp.eq.s32.totalorder %v591, %v1444
  %vm1460 = vcmp.eq.s32.totalorder %v592, %v1444
  %v1461 = vsel %vm1445, 1.0, 0.0
  %v1462 = vsel %vm1446, 1.0, 0.0
  %v1463 = vsel %vm1447, 1.0, 0.0
  %v1464 = vsel %vm1448, 1.0, 0.0
  %v1465 = vsel %vm1449, 1.0, 0.0
  %v1466 = vsel %vm1450, 1.0, 0.0
  %v1467 = vsel %vm1451, 1.0, 0.0
  %v1468 = vsel %vm1452, 1.0, 0.0
  %v1469 = vsel %vm1453, 1.0, 0.0
  %v1470 = vsel %vm1454, 1.0, 0.0
  %v1471 = vsel %vm1455, 1.0, 0.0
  %v1472 = vsel %vm1456, 1.0, 0.0
  %v1473 = vsel %vm1457, 1.0, 0.0
  %v1474 = vsel %vm1458, 1.0, 0.0
  %v1475 = vsel %vm1459, 1.0, 0.0
  %v1476 = vsel %vm1460, 1.0, 0.0
  %v1478 = vrot.slane %v568, 4
  %1480 = vmatprep.subr.mxu0 0.0
  %1481 = vmatpush1.msra.mxu0 %v1461
  %1482 = vmatprep.subr.mxu0 0.0
  %1483 = vmatpush1.msra.mxu0 %v1462
  %1484 = vmatprep.subr.mxu0 0.0
  %1485 = vmatpush1.msra.mxu0 %v1463
  %1486 = vmatprep.subr.mxu0 0.0
  %1487 = vmatpush1.msra.mxu0 %v1464
  %1488 = vmatprep.subr.mxu0 0.0
  %1489 = vmatpush1.msra.mxu0 %v1465
  %1490 = vmatprep.subr.mxu0 0.0
  %1491 = vmatpush1.msra.mxu0 %v1466
  %1492 = vmatprep.subr.mxu0 0.0
  %1493 = vmatpush1.msra.mxu0 %v1467
  %1494 = vmatprep.subr.mxu0 0.0
  %1495 = vmatpush1.msra.mxu0 %v1468
  %1496 = vmatprep.subr.mxu0 0.0
  %1497 = vmatpush1.msra.mxu0 %v1469
  %1498 = vmatprep.subr.mxu0 0.0
  %1499 = vmatpush1.msra.mxu0 %v1470
  %1500 = vmatprep.subr.mxu0 0.0
  %1501 = vmatpush1.msra.mxu0 %v1471
  %1502 = vmatprep.subr.mxu0 0.0
  %1503 = vmatpush1.msra.mxu0 %v1472
  %1504 = vmatprep.subr.mxu0 0.0
  %1505 = vmatpush1.msra.mxu0 %v1473
  %1506 = vmatprep.subr.mxu0 0.0
  %1507 = vmatpush1.msra.mxu0 %v1474
  %1508 = vmatprep.subr.mxu0 0.0
  %1509 = vmatpush1.msra.mxu0 %v1475
  %1510 = vmatprep.subr.mxu0 0.0
  %1511 = vmatpush1.msra.mxu0 %v1476
  %1512 = vmatprep.subr.mxu0 0.0
  %1513 = vmatpush1.msra.mxu0 0.0
  %1514 = vmatprep.subr.mxu0 0.0
  %1515 = vmatpush1.msra.mxu0 0.0
  %1516 = vmatprep.subr.mxu0 0.0
  %1517 = vmatpush1.msra.mxu0 0.0
  %1518 = vmatprep.subr.mxu0 0.0
  %1519 = vmatpush1.msra.mxu0 0.0
  %1520 = vmatprep.subr.mxu0 0.0
  %1521 = vmatpush1.msra.mxu0 0.0
  %1522 = vmatprep.subr.mxu0 0.0
  %1523 = vmatpush1.msra.mxu0 0.0
  %1524 = vmatprep.subr.mxu0 0.0
  %1525 = vmatpush1.msra.mxu0 0.0
  %1526 = vmatprep.subr.mxu0 0.0
  %1527 = vmatpush1.msra.mxu0 0.0
  %1528 = vmatprep.subr.mxu0 0.0
  %1529 = vmatpush1.msra.mxu0 0.0
  %1530 = vmatprep.subr.mxu0 0.0
  %1531 = vmatpush1.msra.mxu0 0.0
  %1532 = vmatprep.subr.mxu0 0.0
  %1533 = vmatpush1.msra.mxu0 0.0
  %1534 = vmatprep.subr.mxu0 0.0
  %1535 = vmatpush1.msra.mxu0 0.0
  %1536 = vmatprep.subr.mxu0 0.0
  %1537 = vmatpush1.msra.mxu0 0.0
  %1538 = vmatprep.subr.mxu0 0.0
  %1539 = vmatpush1.msra.mxu0 0.0
  %1540 = vmatprep.subr.mxu0 0.0
  %1541 = vmatpush1.msra.mxu0 0.0
  %1542 = vmatprep.subr.mxu0 0.0
  %1543 = vmatpush1.msra.mxu0 0.0
  %1544 = vmatprep.mubr.f32.mxu0 0.0
  %1545 = vmatmul.mubr.f32.gmra.mrb[0].mxu0 %v1478
  %v1546 = vpop.f32.mrb[0].mxu0
  %v1547 = vadd.f32 0.0, %v1546
  %v1548 = vpop.f32.mrb[0].mxu0
  %1549 = vdwg.mxu0
  %v1550 = vadd.f32 %v1438, %v1547
  %s1551 = scalar_lea.vmem %s4, 8
  %v1552 = vld [vmem:[%s1551] sm:$0x1]
  %v1553 = vlaneseq
  %v1554 = vshrl.u32 %v1553, 7
  %v1555 = vsub.s32 0, %v1554
  %v1556 = vrot.slane %v1552, %v1555
  %vm1557 = vcmp.eq.s32.totalorder %v577, %v1556
  %vm1558 = vcmp.eq.s32.totalorder %v578, %v1556
  %vm1559 = vcmp.eq.s32.totalorder %v579, %v1556
  %vm1560 = vcmp.eq.s32.totalorder %v580, %v1556
  %vm1561 = vcmp.eq.s32.totalorder %v581, %v1556
  %vm1562 = vcmp.eq.s32.totalorder %v582, %v1556
  %vm1563 = vcmp.eq.s32.totalorder %v583, %v1556
  %vm1564 = vcmp.eq.s32.totalorder %v584, %v1556
  %vm1565 = vcmp.eq.s32.totalorder %v585, %v1556
  %vm1566 = vcmp.eq.s32.totalorder %v586, %v1556
  %vm1567 = vcmp.eq.s32.totalorder %v587, %v1556
  %vm1568 = vcmp.eq.s32.totalorder %v588, %v1556
  %vm1569 = vcmp.eq.s32.totalorder %v589, %v1556
  %vm1570 = vcmp.eq.s32.totalorder %v590, %v1556
  %vm1571 = vcmp.eq.s32.totalorder %v591, %v1556
  %vm1572 = vcmp.eq.s32.totalorder %v592, %v1556
  %v1573 = vsel %vm1557, 1.0, 0.0
  %v1574 = vsel %vm1558, 1.0, 0.0
  %v1575 = vsel %vm1559, 1.0, 0.0
  %v1576 = vsel %vm1560, 1.0, 0.0
  %v1577 = vsel %vm1561, 1.0, 0.0
  %v1578 = vsel %vm1562, 1.0, 0.0
  %v1579 = vsel %vm1563, 1.0, 0.0
  %v1580 = vsel %vm1564, 1.0, 0.0
  %v1581 = vsel %vm1565, 1.0, 0.0
  %v1582 = vsel %vm1566, 1.0, 0.0
  %v1583 = vsel %vm1567, 1.0, 0.0
  %v1584 = vsel %vm1568, 1.0, 0.0
  %v1585 = vsel %vm1569, 1.0, 0.0
  %v1586 = vsel %vm1570, 1.0, 0.0
  %v1587 = vsel %vm1571, 1.0, 0.0
  %v1588 = vsel %vm1572, 1.0, 0.0
  %1589 = vmatprep.subr.mxu0 0.0
  %1590 = vmatpush1.msra.mxu0 %v1573
  %1591 = vmatprep.subr.mxu0 0.0
  %1592 = vmatpush1.msra.mxu0 %v1574
  %1593 = vmatprep.subr.mxu0 0.0
  %1594 = vmatpush1.msra.mxu0 %v1575
  %1595 = vmatprep.subr.mxu0 0.0
  %1596 = vmatpush1.msra.mxu0 %v1576
  %1597 = vmatprep.subr.mxu0 0.0
  %1598 = vmatpush1.msra.mxu0 %v1577
  %1599 = vmatprep.subr.mxu0 0.0
  %1600 = vmatpush1.msra.mxu0 %v1578
  %1601 = vmatprep.subr.mxu0 0.0
  %1602 = vmatpush1.msra.mxu0 %v1579
  %1603 = vmatprep.subr.mxu0 0.0
  %1604 = vmatpush1.msra.mxu0 %v1580
  %1605 = vmatprep.subr.mxu0 0.0
  %1606 = vmatpush1.msra.mxu0 %v1581
  %1607 = vmatprep.subr.mxu0 0.0
  %1608 = vmatpush1.msra.mxu0 %v1582
  %1609 = vmatprep.subr.mxu0 0.0
  %1610 = vmatpush1.msra.mxu0 %v1583
  %1611 = vmatprep.subr.mxu0 0.0
  %1612 = vmatpush1.msra.mxu0 %v1584
  %1613 = vmatprep.subr.mxu0 0.0
  %1614 = vmatpush1.msra.mxu0 %v1585
  %1615 = vmatprep.subr.mxu0 0.0
  %1616 = vmatpush1.msra.mxu0 %v1586
  %1617 = vmatprep.subr.mxu0 0.0
  %1618 = vmatpush1.msra.mxu0 %v1587
  %1619 = vmatprep.subr.mxu0 0.0
  %1620 = vmatpush1.msra.mxu0 %v1588
  %1621 = vmatprep.subr.mxu0 0.0
  %1622 = vmatpush1.msra.mxu0 0.0
  %1623 = vmatprep.subr.mxu0 0.0
  %1624 = vmatpush1.msra.mxu0 0.0
  %1625 = vmatprep.subr.mxu0 0.0
  %1626 = vmatpush1.msra.mxu0 0.0
  %1627 = vmatprep.subr.mxu0 0.0
  %1628 = vmatpush1.msra.mxu0 0.0
  %1629 = vmatprep.subr.mxu0 0.0
  %1630 = vmatpush1.msra.mxu0 0.0
  %1631 = vmatprep.subr.mxu0 0.0
  %1632 = vmatpush1.msra.mxu0 0.0
  %1633 = vmatprep.subr.mxu0 0.0
  %1634 = vmatpush1.msra.mxu0 0.0
  %1635 = vmatprep.subr.mxu0 0.0
  %1636 = vmatpush1.msra.mxu0 0.0
  %1637 = vmatprep.subr.mxu0 0.0
  %1638 = vmatpush1.msra.mxu0 0.0
  %1639 = vmatprep.subr.mxu0 0.0
  %1640 = vmatpush1.msra.mxu0 0.0
  %1641 = vmatprep.subr.mxu0 0.0
  %1642 = vmatpush1.msra.mxu0 0.0
  %1643 = vmatprep.subr.mxu0 0.0
  %1644 = vmatpush1.msra.mxu0 0.0
  %1645 = vmatprep.subr.mxu0 0.0
  %1646 = vmatpush1.msra.mxu0 0.0
  %1647 = vmatprep.subr.mxu0 0.0
  %1648 = vmatpush1.msra.mxu0 0.0
  %1649 = vmatprep.subr.mxu0 0.0
  %1650 = vmatpush1.msra.mxu0 0.0
  %1651 = vmatprep.subr.mxu0 0.0
  %1652 = vmatpush1.msra.mxu0 0.0
  %1653 = vmatprep.mubr.f32.mxu0 0.0
  %1654 = vmatmul.mubr.f32.gmra.mrb[0].mxu0 %v573
  %v1655 = vpop.f32.mrb[0].mxu0
  %v1656 = vadd.f32 0.0, %v1655
  %v1657 = vpop.f32.mrb[0].mxu0
  %1658 = vdwg.mxu0
  %v1659 = vadd.f32 %v1550, %v1656
  %v1660 = vld [vmem:[%s9] sm:$0xf]
  %1662 = vset.pattern.permute.xlu0 0
  %1663 = vperm.xlu0 %1662, %v1660
  %v1664 = vpop.permute.xlu0 %1663
  %v1666 = vadd.f32 %v1659, %v1664
  %v1667 = vld [vmem:[%s11] sm:$0xf]
  %1669 = vset.pattern.permute.xlu0 0
  %1670 = vperm.xlu0 %1669, %v1667
  %v1671 = vpop.permute.xlu0 %1670
  %v1673 = vadd.f32 %v1666, %v1671
  %vm1674 = vcmask 257024
  %1675 = vst.msk [vmem:[%s16] sm:$0xf] %vm1674, %v1673
  // Predicated region
  $region66: #{resblock_downsample_forward.1} parent=0 // pred_check
    _
  $region67: #{resblock_downsample_forward.1} parent=0 // pred_check_branch
    %1677 = sbr.rel (0) target = $region69
  $region68: #{resblock_downsample_forward.1} parent=0 // pred_region
    _
  $region69: #{resblock_downsample_forward.1} parent=0 // pred_fallthru
    _
  // Predicated region
  $region70: #{resblock_downsample_forward.1} parent=0 // pred_check
    _
  $region71: #{resblock_downsample_forward.1} parent=0 // pred_check_branch
    %1679 = sbr.rel (0) target = $region73
  $region72: #{resblock_downsample_forward.1} parent=0 // pred_region
    _
  $region73: #{resblock_downsample_forward.1} parent=0 // pred_fallthru
    _

</llo_original>
